<compile_context>
chip_gen: v6e
topology: v6e:2x2x1
jax: 0.10.0
libtpu: 0.0.40
codegen_flags: <defaults>
</compile_context>

<pallas_src>
import jax
import jax.numpy as jnp
from jax.experimental import pallas as pl
from jax.experimental.pallas import tpu as pltpu


def nonlocal_kernel(xq_ref, thw_ref, phpt_ref, gaug_ref, exw_ref, shift_ref, o_ref):
    # xq_ref:    (C, tq)     f32   query tile of x (also the residual)
    # thw_ref:   (C2, C)     bf16  theta 1x1x1-conv weight
    # phpt_ref:  (Np, C2)    bf16  pooled phi keys, transposed
    # gaug_ref:  (C2+1, Np)  bf16  pooled g values with a trailing ones row
    # exw_ref:   (C, C2)     bf16  expand weight with BN scale folded in
    # shift_ref: (C, 1)      f32   BN shift
    # o_ref:     (C, tq)     f32
    c2 = gaug_ref.shape[0] - 1

    xq = xq_ref[...]                                                     # (C, tq) f32

    # theta projection for this query tile: (C2, C) @ (C, tq) -> (C2, tq)
    th = jnp.dot(thw_ref[...], xq.astype(jnp.bfloat16),
                 preferred_element_type=jnp.float32)

    # f^T = phi_pooled^T @ theta -> (Np, tq); standard MXU orientation, lane-dense tq
    ft = jnp.dot(phpt_ref[...], th.astype(jnp.bfloat16),
                 preferred_element_type=jnp.float32)

    # unnormalized softmax over the pooled-key (sublane) axis
    ft = ft - jnp.max(ft, axis=0, keepdims=True)
    p = jnp.exp(ft)                                                      # (Np, tq), <= 1

    # [g_pooled ; ones] @ p -> (C2+1, tq): rows 0..C2-1 are the unnormalized values,
    # row C2 is the softmax denominator (row-sum) computed for free on the MXU.
    yu = jnp.dot(gaug_ref[...], p.astype(jnp.bfloat16),
                 preferred_element_type=jnp.float32)

    inv = pl.reciprocal(yu[c2:c2 + 1, :], approx=True)                   # (1, tq)
    yv = (yu[0:c2, :] * inv).astype(jnp.bfloat16)                        # (C2, tq)

    # expand 1x1x1 conv (BN scale folded in): (C, C2) @ (C2, tq) -> (C, tq)
    y_c = jnp.dot(exw_ref[...], yv, preferred_element_type=jnp.float32)

    # residual + BN shift
    o_ref[...] = xq + y_c + shift_ref[...]


def _vmem_limit_bytes():
    try:
        cap = pltpu.get_tpu_info().vmem_capacity_bytes
    except Exception:
        return None
    if cap <= 64 * 1024 * 1024:      # v7x: 64 MiB physical per TC -> leave headroom
        return 48 * 1024 * 1024
    return 100 * 1024 * 1024         # v5e / v6e: 128 MiB physical


def _pick_query_tile(n_pad, cap):
    # largest multiple-of-128 divisor of n_pad that is <= cap (n_pad % 128 == 0)
    best = 128
    t = 128
    while t <= min(n_pad, cap):
        if n_pad % t == 0:
            best = t
        t += 128
    return best


def nonlocal_block(x, params, computation_compression=2, eps=1e-5):
    assert computation_compression == 2, "kernel specialized for compression=2"
    B, C, D1, D2, D3 = x.shape
    N = D1 * D2 * D3
    Np = N // 2
    C2 = C // 2

    xf = x.reshape(B, C, N).astype(jnp.float32)

    # --- hoisted phi/g projection + MaxPool1d(k=2), plain XLA ----------------------
    # pool(proj(x))[:, j] = max(proj(x)[:, 2j], proj(x)[:, 2j+1]); trailing odd
    # column dropped, matching PyTorch MaxPool1d.
    pg_w = jnp.concatenate([params["phi_w"], params["g_w"]], axis=0)      # (2*C2, C)
    proj = jnp.einsum("oc,bcn->bon", pg_w, xf)                            # (B, 2*C2, N)
    pooled = proj[:, :, :2 * Np].reshape(B, 2 * C2, Np, 2).max(axis=-1)   # (B, 2*C2, Np)
    php_t = jnp.transpose(pooled[:, :C2, :], (0, 2, 1)).astype(jnp.bfloat16)  # (B, Np, C2)
    g_aug = jnp.concatenate(
        [pooled[:, C2:, :], jnp.ones((B, 1, Np), pooled.dtype)],
        axis=1).astype(jnp.bfloat16)                                       # (B, C2+1, Np)

    # eval-mode BatchNorm folded: scale into the expand weight, shift kept separate.
    # TODO(synk): training-mode BatchNorm (batch statistics + running-stat update)
    # is not reproduced; eval-mode running stats are used instead.
    inv_std = 1.0 / jnp.sqrt(params["rvar"] + eps)
    scale = params["gamma"] * inv_std                                      # (C,)
    shift = (params["beta"] - params["rmean"] * scale).reshape(C, 1).astype(jnp.float32)
    exw_s = (params["expand_w"] * scale[:, None]).astype(jnp.bfloat16)     # (C, C2)
    thw = params["theta_w"].astype(jnp.bfloat16)                           # (C2, C)

    # --- query-axis tiling: pad N to a multiple of 128, slice the tail afterwards ---
    vmem_limit = _vmem_limit_bytes()
    tq_cap = 512 if (vmem_limit is None or vmem_limit <= 48 * 1024 * 1024) else 1024
    N_pad = ((N + 127) // 128) * 128
    xq_in = xf if N_pad == N else jnp.pad(xf, ((0, 0), (0, 0), (0, N_pad - N)))
    tq = _pick_query_tile(N_pad, tq_cap)
    nq = N_pad // tq

    out_flat = pl.pallas_call(
        nonlocal_kernel,
        out_shape=jax.ShapeDtypeStruct((B, C, N_pad), jnp.float32),
        grid_spec=pltpu.PrefetchScalarGridSpec(
            num_scalar_prefetch=0,
            grid=(B, nq),
            in_specs=[
                pl.BlockSpec((None, C, tq), lambda b, q: (b, 0, q)),       # x query tile
                pl.BlockSpec((C2, C), lambda b, q: (0, 0)),                # theta W
                pl.BlockSpec((None, Np, C2), lambda b, q: (b, 0, 0)),      # pooled phi^T
                pl.BlockSpec((None, C2 + 1, Np), lambda b, q: (b, 0, 0)),  # pooled g + ones
                pl.BlockSpec((C, C2), lambda b, q: (0, 0)),                # expand W * BN scale
                pl.BlockSpec((C, 1), lambda b, q: (0, 0)),                 # BN shift
            ],
            out_specs=pl.BlockSpec((None, C, tq), lambda b, q: (b, 0, q)),
        ),
        compiler_params=pltpu.CompilerParams(
            # pooled K/V is passed as a per-batch input block (no cross-step scratch),
            # so both grid axes are independent -> shardable across v7x TensorCores.
            dimension_semantics=("parallel", "parallel"),
            vmem_limit_bytes=vmem_limit),
    )(xq_in, thw, php_t, g_aug, exw_s, shift)

    out = out_flat[:, :, :N] if N_pad != N else out_flat
    return out.reshape(B, C, D1, D2, D3)


def reference_forward(x, params, computation_compression=2, eps=1e-5):
    # Pure-JAX reference mirroring the PyTorch forward (embedded mode, eval BN).
    B, C, D1, D2, D3 = x.shape
    N = D1 * D2 * D3
    cc = computation_compression
    Np = N // cc
    xf = x.reshape(B, C, N).astype(jnp.float32)
    th = jnp.einsum("oc,bcn->bon", params["theta_w"], xf)
    ph = jnp.einsum("oc,bcn->bon", params["phi_w"], xf)
    g = jnp.einsum("oc,bcn->bon", params["g_w"], xf)
    ph_p = ph[:, :, :Np * cc].reshape(B, C // 2, Np, cc).max(axis=-1)
    g_p = g[:, :, :Np * cc].reshape(B, C // 2, Np, cc).max(axis=-1)
    f = jnp.einsum("bcn,bcm->bnm", th, ph_p)
    f = jax.nn.softmax(f, axis=-1)
    y = jnp.einsum("bnm,bcm->bnc", f, g_p)
    y = jnp.einsum("oc,bnc->bon", params["expand_w"], y)
    inv_std = 1.0 / jnp.sqrt(params["rvar"] + eps)
    scale = params["gamma"] * inv_std
    shift = params["beta"] - params["rmean"] * scale
    y = y * scale[None, :, None] + shift[None, :, None]
    return (xf + y).reshape(B, C, D1, D2, D3)


if __name__ == "__main__":
    # in_channels=16, spatial 8x8x16 -> N=1024, Np=512 ; exercises multiple query tiles.
    B, C, D1, D2, D3 = 2, 16, 8, 8, 16
    key = jax.random.PRNGKey(0)
    kx, k1, k2, k3, k4, k5, k6, k7, k8 = jax.random.split(key, 9)

    x = jax.random.normal(kx, (B, C, D1, D2, D3), dtype=jnp.float32)

    C2 = C // 2
    params = {
        # 1x1x1 Conv3d weights (out_ch, in_ch), bias=False
        "theta_w": 0.2 * jax.random.normal(k1, (C2, C), dtype=jnp.float32),
        "phi_w": 0.2 * jax.random.normal(k2, (C2, C), dtype=jnp.float32),
        "g_w": 0.2 * jax.random.normal(k3, (C2, C), dtype=jnp.float32),
        "expand_w": 0.2 * jax.random.normal(k4, (C, C2), dtype=jnp.float32),
        # BatchNorm3d params + running stats (inference-mode normalization)
        "gamma": 0.5 + jax.random.uniform(k5, (C,), dtype=jnp.float32),
        "beta": 0.1 * jax.random.normal(k6, (C,), dtype=jnp.float32),
        "rmean": 0.1 * jax.random.normal(k7, (C,), dtype=jnp.float32),
        "rvar": 0.5 + jax.random.uniform(k8, (C,), dtype=jnp.float32),
    }

    out = nonlocal_block(x, params)
    out = jax.block_until_ready(out)

    ref = reference_forward(x, params)
    assert out.shape == ref.shape
    # bf16-operand / f32-accumulation matmuls + approx reciprocal -> compare at 2e-2.
    assert jnp.allclose(out, ref, rtol=2e-2, atol=2e-2), (
        "mismatch: max abs err = %e" % float(jnp.max(jnp.abs(out - ref))))

    print("KERNEL_OK")
</pallas_src>

<mosaic_0001>
module attributes {stable_mosaic.version = 11 : i64} {
  func.func @nonlocal_kernel(%arg0: i32, %arg1: i32, %arg2: memref<1x16x512xf32, #tpu.memory_space<vmem>>, %arg3: memref<8x16xbf16, #tpu.memory_space<vmem>>, %arg4: memref<1x512x8xbf16, #tpu.memory_space<vmem>>, %arg5: memref<1x9x512xbf16, #tpu.memory_space<vmem>>, %arg6: memref<16x8xbf16, #tpu.memory_space<vmem>>, %arg7: memref<16x1xf32, #tpu.memory_space<vmem>>, %arg8: memref<1x16x512xf32, #tpu.memory_space<vmem>>) attributes {dimension_semantics = [#tpu.dimension_semantics<parallel>, #tpu.dimension_semantics<parallel>], iteration_bounds = array<i64: 2, 2>, scalar_prefetch = 0 : i64, scratch_operands = 0 : i64, tpu.core_type = #tpu.core_type<tc>, window_params = [{transform_indices = @transform_0, window_bounds = array<i64: 1, 16, 512>}, {pipeline_mode = #tpu.pipeline_mode<synchronous>, transform_indices = @transform_1, window_bounds = array<i64: 8, 16>}, {transform_indices = @transform_2, window_bounds = array<i64: 1, 512, 8>}, {transform_indices = @transform_3, window_bounds = array<i64: 1, 9, 512>}, {pipeline_mode = #tpu.pipeline_mode<synchronous>, transform_indices = @transform_4, window_bounds = array<i64: 16, 8>}, {pipeline_mode = #tpu.pipeline_mode<synchronous>, transform_indices = @transform_5, window_bounds = array<i64: 16, 1>}, {transform_indices = @transform_6, window_bounds = array<i64: 1, 16, 512>}]} {
    %c0 = arith.constant 0 : index
    %c0_0 = arith.constant 0 : index
    %c0_1 = arith.constant 0 : index
    %0 = vector.load %arg2[%c0, %c0_0, %c0_1] : memref<1x16x512xf32, #tpu.memory_space<vmem>>, vector<1x16x512xf32>
    %1 = vector.shape_cast %0 : vector<1x16x512xf32> to vector<16x512xf32>
    %c0_2 = arith.constant 0 : index
    %c0_3 = arith.constant 0 : index
    %2 = vector.load %arg3[%c0_2, %c0_3] : memref<8x16xbf16, #tpu.memory_space<vmem>>, vector<8x16xbf16>
    %3 = arith.truncf %1 : vector<16x512xf32> to vector<16x512xbf16>
    %cst = arith.constant dense<0.000000e+00> : vector<8x512xf32>
    %4 = tpu.matmul %2, %3, %cst {dimension_numbers = #tpu.dot_dimension_numbers<[1], [0], [0], [1], [0, 0, 1, 1], [], []>} : vector<8x16xbf16>, vector<16x512xbf16>, vector<8x512xf32> -> vector<8x512xf32>
    %c0_4 = arith.constant 0 : index
    %c0_5 = arith.constant 0 : index
    %c0_6 = arith.constant 0 : index
    %5 = vector.load %arg4[%c0_4, %c0_5, %c0_6] : memref<1x512x8xbf16, #tpu.memory_space<vmem>>, vector<1x512x8xbf16>
    %6 = vector.shape_cast %5 : vector<1x512x8xbf16> to vector<512x8xbf16>
    %7 = arith.truncf %4 : vector<8x512xf32> to vector<8x512xbf16>
    %cst_7 = arith.constant dense<0.000000e+00> : vector<512x512xf32>
    %8 = tpu.matmul %6, %7, %cst_7 {dimension_numbers = #tpu.dot_dimension_numbers<[1], [0], [0], [1], [0, 0, 1, 1], [], []>} : vector<512x8xbf16>, vector<8x512xbf16>, vector<512x512xf32> -> vector<512x512xf32>
    %cst_8 = arith.constant dense<0xFF800000> : vector<512xf32>
    %9 = vector.multi_reduction <maximumf>, %8, %cst_8 [0] : vector<512x512xf32> to vector<512xf32>
    %10 = vector.shape_cast %9 : vector<512xf32> to vector<1x512xf32>
    %11 = vector.broadcast %10 : vector<1x512xf32> to vector<512x512xf32>
    %12 = arith.subf %8, %11 : vector<512x512xf32>
    %13 = math.exp %12 : vector<512x512xf32>
    %c0_9 = arith.constant 0 : index
    %c0_10 = arith.constant 0 : index
    %c0_11 = arith.constant 0 : index
    %14 = vector.load %arg5[%c0_9, %c0_10, %c0_11] : memref<1x9x512xbf16, #tpu.memory_space<vmem>>, vector<1x9x512xbf16>
    %15 = vector.shape_cast %14 : vector<1x9x512xbf16> to vector<9x512xbf16>
    %16 = arith.truncf %13 : vector<512x512xf32> to vector<512x512xbf16>
    %cst_12 = arith.constant dense<0.000000e+00> : vector<9x512xf32>
    %17 = tpu.matmul %15, %16, %cst_12 {dimension_numbers = #tpu.dot_dimension_numbers<[1], [0], [0], [1], [0, 0, 1, 1], [], []>} : vector<9x512xbf16>, vector<512x512xbf16>, vector<9x512xf32> -> vector<9x512xf32>
    %18 = vector.extract_strided_slice %17 {offsets = [8, 0], sizes = [1, 512], strides = [1, 1]} : vector<9x512xf32> to vector<1x512xf32>
    %19 = tpu.reciprocal %18 {approx = true} : vector<1x512xf32> -> vector<1x512xf32>
    %20 = vector.extract_strided_slice %17 {offsets = [0, 0], sizes = [8, 512], strides = [1, 1]} : vector<9x512xf32> to vector<8x512xf32>
    %21 = vector.broadcast %19 : vector<1x512xf32> to vector<8x512xf32>
    %22 = arith.mulf %20, %21 : vector<8x512xf32>
    %23 = arith.truncf %22 : vector<8x512xf32> to vector<8x512xbf16>
    %c0_13 = arith.constant 0 : index
    %c0_14 = arith.constant 0 : index
    %24 = vector.load %arg6[%c0_13, %c0_14] : memref<16x8xbf16, #tpu.memory_space<vmem>>, vector<16x8xbf16>
    %cst_15 = arith.constant dense<0.000000e+00> : vector<16x512xf32>
    %25 = tpu.matmul %24, %23, %cst_15 {dimension_numbers = #tpu.dot_dimension_numbers<[1], [0], [0], [1], [0, 0, 1, 1], [], []>} : vector<16x8xbf16>, vector<8x512xbf16>, vector<16x512xf32> -> vector<16x512xf32>
    %26 = arith.addf %1, %25 : vector<16x512xf32>
    %c0_16 = arith.constant 0 : index
    %c0_17 = arith.constant 0 : index
    %27 = vector.load %arg7[%c0_16, %c0_17] : memref<16x1xf32, #tpu.memory_space<vmem>>, vector<16x1xf32>
    %28 = vector.broadcast %27 : vector<16x1xf32> to vector<16x512xf32>
    %29 = arith.addf %26, %28 : vector<16x512xf32>
    %c0_18 = arith.constant 0 : index
    %c0_19 = arith.constant 0 : index
    %c0_20 = arith.constant 0 : index
    %30 = vector.load %arg8[%c0_18, %c0_19, %c0_20] : memref<1x16x512xf32, #tpu.memory_space<vmem>>, vector<1x16x512xf32>
    %31 = vector.shape_cast %30 : vector<1x16x512xf32> to vector<16x512xf32>
    %32 = vector.shape_cast %29 : vector<16x512xf32> to vector<1x16x512xf32>
    tpu.vector_store %arg8[%c0_18, %c0_19, %c0_20], %32 {strides = array<i32>} : memref<1x16x512xf32, #tpu.memory_space<vmem>>, vector<1x16x512xf32>,
    return
  }
  func.func @transform_0(%arg0: i32, %arg1: i32) -> (i32, i32, i32) {
    %c0_i32 = arith.constant 0 : i32
    %c0_i32_0 = arith.constant 0 : i32
    return %arg0, %c0_i32, %arg1 : i32, i32, i32
  }
  func.func @transform_1(%arg0: i32, %arg1: i32) -> (i32, i32) {
    %c0_i32 = arith.constant 0 : i32
    %c0_i32_0 = arith.constant 0 : i32
    %c0_i32_1 = arith.constant 0 : i32
    return %c0_i32, %c0_i32_0 : i32, i32
  }
  func.func @transform_2(%arg0: i32, %arg1: i32) -> (i32, i32, i32) {
    %c0_i32 = arith.constant 0 : i32
    %c0_i32_0 = arith.constant 0 : i32
    %c0_i32_1 = arith.constant 0 : i32
    return %arg0, %c0_i32, %c0_i32_0 : i32, i32, i32
  }
  func.func @transform_3(%arg0: i32, %arg1: i32) -> (i32, i32, i32) {
    %c0_i32 = arith.constant 0 : i32
    %c0_i32_0 = arith.constant 0 : i32
    %c0_i32_1 = arith.constant 0 : i32
    return %arg0, %c0_i32, %c0_i32_0 : i32, i32, i32
  }
  func.func @transform_4(%arg0: i32, %arg1: i32) -> (i32, i32) {
    %c0_i32 = arith.constant 0 : i32
    %c0_i32_0 = arith.constant 0 : i32
    %c0_i32_1 = arith.constant 0 : i32
    return %c0_i32, %c0_i32_0 : i32, i32
  }
  func.func @transform_5(%arg0: i32, %arg1: i32) -> (i32, i32) {
    %c0_i32 = arith.constant 0 : i32
    %c0_i32_0 = arith.constant 0 : i32
    %c0_i32_1 = arith.constant 0 : i32
    return %c0_i32, %c0_i32_0 : i32, i32
  }
  func.func @transform_6(%arg0: i32, %arg1: i32) -> (i32, i32, i32) {
    %c0_i32 = arith.constant 0 : i32
    %c0_i32_0 = arith.constant 0 : i32
    return %arg0, %c0_i32, %arg1 : i32, i32, i32
  }
}

</mosaic_0001>

<llo_original>
// kernel: tpu_custom_call.1
$region0: #{tpu_custom_call.1}
  #allocation0 [shape = 'u32[]', space=smem, size = 0x4, offset = 0x4, fixed_abs, tag = 'smem constant byte address 0x4 - core index']
  #allocation1 [shape = 'u32[144,128]{1,0:T(1,128)}', space=vmem, size = 0x12000, scoped, tag = 'internal scratch']
  %s0 = inlined_call_operand.vmem [shape: f32[2,16,1024], index: 0, kind: input, shape index: {}]
  %s1 = inlined_call_operand.vmem [shape: bf16[8,16], index: 1, kind: input, shape index: {}]
  %s2 = inlined_call_operand.vmem [shape: bf16[2,512,8], index: 2, kind: input, shape index: {}]
  %s3 = inlined_call_operand.vmem [shape: bf16[2,9,512], index: 3, kind: input, shape index: {}]
  %s4 = inlined_call_operand.vmem [shape: bf16[16,8], index: 4, kind: input, shape index: {}]
  %s5 = inlined_call_operand.vmem [shape: f32[16,1], index: 5, kind: input, shape index: {}]
  %s6 = inlined_call_operand.hbm [shape: f32[2,16,1024], index: 6, kind: output, shape index: {}]
  %s7 = sld [smem:[#allocation0]]
  $region80: #{tpu_custom_call.1} parent=0
    _
  %s9 = ssub.s32 1, %s7
  %s10 = scalar_select 0, %s9, %s7
  $region1: #{tpu_custom_call.1} parent=0
    #allocation2 [shape = 'u8[65536]{0}', space=vmem, size = 0x10000, scoped, tag = 'input window, operand 0']
    #allocation3 [shape = 'u8[65536]{0}', space=vmem, size = 0x10000, scoped, tag = 'output window, operand 0']
    #allocation4 [shape = 's32[2]{0}', space=sflag, size = 0x8, scoped, tag = 'scoped memory for tpu_custom_call.1']
    %11 = vsyncpa [#allocation4], 0
    %s12 = scalar_lea.sflag [#allocation4], 1
    %13 = vsyncpa %s12, 0
    loop: start=0, step=1, limit=6
    $region2: #{tpu_custom_call.1} parent=1 // loop_pre_header
      _
    $region3: #{tpu_custom_call.1} parent=1 // loop_header
      %s15 = sphi 0, %s19
      %p16 = scmp.ge.s32.totalorder %s15, 6
      %s22 = sphi 0, %s34
      %s23 = sphi 0, %s30
      %s24 = sphi 0, %s22
      %s25 = sphi 0, %s23
      %s26 = sphi 0, %s24
      %s27 = sphi 0, %s25
      %s39 = sphi 0, %s41
      %s42 = sphi 0, %s39
      %s43 = sphi 0, %s42
      %s59 = sphi 0, %s43
      %s63 = sphi 0, %s63
      %s65 = sphi 0, %s63
      %s66 = sphi 0, %s65
      %s80 = sphi 0, %s66
      %s86 = sphi 0, %s88
      %s89 = sphi 0, %s86
      %s90 = sphi 0, %s89
      %s106 = sphi 0, %s90
      %s112 = sphi 0, %s114
      %s115 = sphi 0, %s112
      %s116 = sphi 0, %s115
      %s132 = sphi 0, %s116
      %s136 = sphi 0, %s136
      %s138 = sphi 0, %s136
      %s139 = sphi 0, %s138
      %s153 = sphi 0, %s139
      %s157 = sphi 0, %s157
      %s159 = sphi 0, %s157
      %s160 = sphi 0, %s159
      %s174 = sphi 0, %s160
      %s182 = sphi 0, %s184
      %s185 = sphi 0, %s182
      %s186 = sphi 0, %s185
      %s202 = sphi 0, %s186
    $region4: #{tpu_custom_call.1} parent=1 // loop_header_branch
      %18 = sbr.rel (%p16) target = $region8
    $region5: #{tpu_custom_call.1} parent=1 // loop_body
      %s20 = ssub.s32 %s15, 1
      %s21 = ssub.s32 %s15, 2
      %s28 = sadd.s32 1, %s23
      %p29 = scmp.ge.s32.totalorder %s28, 2
      %s30 = scalar_select %p29, 0, %s28
      %s31 = sadd.s32 1, %s22
      %s32 = scalar_select %p29, %s31, %s22
      %p33 = scmp.ge.s32.totalorder %s32, 2
      %s34 = scalar_select %p33, 0, %s32
      %s35 = ssub.s32 %s22, %s34
      %s36 = ssub.s32 %s23, %s30
      %s37 = sor.u32 %s35, %s36
      %p38 = scmp.eq.s32.totalorder %s37, 0
      %s40 = sadd.s32 %s39, 1
      %s41 = scalar_select %p38, %s39, %s40
      %p44 = pneg %p38
      %p45 = scmp.eq.s32.totalorder %s15, 3
      %p46 = por %p44, %p45
      %p47 = scmp.ne.s32.totalorder %s39, %s42
      %p48 = scmp.eq.s32.totalorder %s15, 0
      %p49 = por %p47, %p48
      %p50 = scmp.ne.s32.totalorder %s39, %s42
      %p51 = scmp.eq.s32.totalorder %s20, 3
      %p52 = por %p50, %p51
      %p53 = scmp.ne.s32.totalorder %s42, %s43
      %p54 = scmp.eq.s32.totalorder %s20, 0
      %p55 = por %p53, %p54
      %p56 = scmp.ne.s32.totalorder %s42, %s43
      %p57 = scmp.eq.s32.totalorder %s21, 3
      %p58 = por %p56, %p57
      %p60 = scmp.ne.s32.totalorder %s43, %s59
      %p61 = scmp.eq.s32.totalorder %s21, 0
      %p62 = por %p60, %p61
      %s64 = sadd.s32 %s63, 1
      %p67 = scmp.eq.s32.totalorder %s15, 3
      %p68 = scmp.ne.s32.totalorder %s63, %s65
      %p69 = scmp.eq.s32.totalorder %s15, 0
      %p70 = por %p68, %p69
      %p71 = scmp.ne.s32.totalorder %s63, %s65
      %p72 = scmp.eq.s32.totalorder %s20, 3
      %p73 = por %p71, %p72
      %p74 = scmp.ne.s32.totalorder %s65, %s66
      %p75 = scmp.eq.s32.totalorder %s20, 0
      %p76 = por %p74, %p75
      %p77 = scmp.ne.s32.totalorder %s65, %s66
      %p78 = scmp.eq.s32.totalorder %s21, 3
      %p79 = por %p77, %p78
      %p81 = scmp.ne.s32.totalorder %s66, %s80
      %p82 = scmp.eq.s32.totalorder %s21, 0
      %p83 = por %p81, %p82
      %s84 = ssub.s32 %s22, %s34
      %p85 = scmp.eq.s32.totalorder %s84, 0
      %s87 = sadd.s32 %s86, 1
      %s88 = scalar_select %p85, %s86, %s87
      %p91 = pneg %p85
      %p92 = scmp.eq.s32.totalorder %s15, 3
      %p93 = por %p91, %p92
      %p94 = scmp.ne.s32.totalorder %s86, %s89
      %p95 = scmp.eq.s32.totalorder %s15, 0
      %p96 = por %p94, %p95
      %p97 = scmp.ne.s32.totalorder %s86, %s89
      %p98 = scmp.eq.s32.totalorder %s20, 3
      %p99 = por %p97, %p98
      %p100 = scmp.ne.s32.totalorder %s89, %s90
      %p101 = scmp.eq.s32.totalorder %s20, 0
      %p102 = por %p100, %p101
      %p103 = scmp.ne.s32.totalorder %s89, %s90
      %p104 = scmp.eq.s32.totalorder %s21, 3
      %p105 = por %p103, %p104
      %p107 = scmp.ne.s32.totalorder %s90, %s106
      %p108 = scmp.eq.s32.totalorder %s21, 0
      %p109 = por %p107, %p108
      %s110 = ssub.s32 %s22, %s34
      %p111 = scmp.eq.s32.totalorder %s110, 0
      %s113 = sadd.s32 %s112, 1
      %s114 = scalar_select %p111, %s112, %s113
      %p117 = pneg %p111
      %p118 = scmp.eq.s32.totalorder %s15, 3
      %p119 = por %p117, %p118
      %p120 = scmp.ne.s32.totalorder %s112, %s115
      %p121 = scmp.eq.s32.totalorder %s15, 0
      %p122 = por %p120, %p121
      %p123 = scmp.ne.s32.totalorder %s112, %s115
      %p124 = scmp.eq.s32.totalorder %s20, 3
      %p125 = por %p123, %p124
      %p126 = scmp.ne.s32.totalorder %s115, %s116
      %p127 = scmp.eq.s32.totalorder %s20, 0
      %p128 = por %p126, %p127
      %p129 = scmp.ne.s32.totalorder %s115, %s116
      %p130 = scmp.eq.s32.totalorder %s21, 3
      %p131 = por %p129, %p130
      %p133 = scmp.ne.s32.totalorder %s116, %s132
      %p134 = scmp.eq.s32.totalorder %s21, 0
      %p135 = por %p133, %p134
      %s137 = sadd.s32 %s136, 1
      %p140 = scmp.eq.s32.totalorder %s15, 3
      %p141 = scmp.ne.s32.totalorder %s136, %s138
      %p142 = scmp.eq.s32.totalorder %s15, 0
      %p143 = por %p141, %p142
      %p144 = scmp.ne.s32.totalorder %s136, %s138
      %p145 = scmp.eq.s32.totalorder %s20, 3
      %p146 = por %p144, %p145
      %p147 = scmp.ne.s32.totalorder %s138, %s139
      %p148 = scmp.eq.s32.totalorder %s20, 0
      %p149 = por %p147, %p148
      %p150 = scmp.ne.s32.totalorder %s138, %s139
      %p151 = scmp.eq.s32.totalorder %s21, 3
      %p152 = por %p150, %p151
      %p154 = scmp.ne.s32.totalorder %s139, %s153
      %p155 = scmp.eq.s32.totalorder %s21, 0
      %p156 = por %p154, %p155
      %s158 = sadd.s32 %s157, 1
      %p161 = scmp.eq.s32.totalorder %s15, 3
      %p162 = scmp.ne.s32.totalorder %s157, %s159
      %p163 = scmp.eq.s32.totalorder %s15, 0
      %p164 = por %p162, %p163
      %p165 = scmp.ne.s32.totalorder %s157, %s159
      %p166 = scmp.eq.s32.totalorder %s20, 3
      %p167 = por %p165, %p166
      %p168 = scmp.ne.s32.totalorder %s159, %s160
      %p169 = scmp.eq.s32.totalorder %s20, 0
      %p170 = por %p168, %p169
      %p171 = scmp.ne.s32.totalorder %s159, %s160
      %p172 = scmp.eq.s32.totalorder %s21, 3
      %p173 = por %p171, %p172
      %p175 = scmp.ne.s32.totalorder %s160, %s174
      %p176 = scmp.eq.s32.totalorder %s21, 0
      %p177 = por %p175, %p176
      %s178 = ssub.s32 %s22, %s34
      %s179 = ssub.s32 %s23, %s30
      %s180 = sor.u32 %s178, %s179
      %p181 = scmp.eq.s32.totalorder %s180, 0
      %s183 = sadd.s32 %s182, 1
      %s184 = scalar_select %p181, %s182, %s183
      %p187 = pneg %p181
      %p188 = scmp.eq.s32.totalorder %s15, 3
      %p189 = por %p187, %p188
      %p190 = scmp.ne.s32.totalorder %s182, %s185
      %p191 = scmp.eq.s32.totalorder %s15, 0
      %p192 = por %p190, %p191
      %p193 = scmp.ne.s32.totalorder %s182, %s185
      %p194 = scmp.eq.s32.totalorder %s20, 3
      %p195 = por %p193, %p194
      %p196 = scmp.ne.s32.totalorder %s185, %s186
      %p197 = scmp.eq.s32.totalorder %s20, 0
      %p198 = por %p196, %p197
      %p199 = scmp.ne.s32.totalorder %s185, %s186
      %p200 = scmp.eq.s32.totalorder %s21, 3
      %p201 = por %p199, %p200
      %p203 = scmp.ne.s32.totalorder %s186, %s202
      %p204 = scmp.eq.s32.totalorder %s21, 0
      %p205 = por %p203, %p204
      %p206 = scmp.le.s32.totalorder 1, %s15
      %p207 = scmp.lt.s32.totalorder %s15, 5
      %p208 = pnand %p206, %p207
      %p209 = pneg %p208
      // Predicated region
      $region9: #{tpu_custom_call.1} parent=5 // pred_check
        _
      $region10: #{tpu_custom_call.1} parent=5 // pred_check_branch
        %211 = sbr.rel (%p208) target = $region12
      $region11: #{tpu_custom_call.1} parent=5 // pred_region
        %s212 = ssub.s32 %s15, 1
        // Predicated region
        $region13: #{tpu_custom_call.1} parent=11 // pred_check
          %p213 = pneg %p76
        $region14: #{tpu_custom_call.1} parent=11 // pred_check_branch
          %215 = sbr.rel (%p213) target = $region16
        $region15: #{tpu_custom_call.1} parent=11 // pred_region
          _
        $region16: #{tpu_custom_call.1} parent=11 // pred_fallthru
          _
        // Predicated region
        $region17: #{tpu_custom_call.1} parent=11 // pred_check
          %p216 = pneg %p149
        $region18: #{tpu_custom_call.1} parent=11 // pred_check_branch
          %218 = sbr.rel (%p216) target = $region20
        $region19: #{tpu_custom_call.1} parent=11 // pred_region
          _
        $region20: #{tpu_custom_call.1} parent=11 // pred_fallthru
          _
        // Predicated region
        $region21: #{tpu_custom_call.1} parent=11 // pred_check
          %p219 = pneg %p170
        $region22: #{tpu_custom_call.1} parent=11 // pred_check_branch
          %221 = sbr.rel (%p219) target = $region24
        $region23: #{tpu_custom_call.1} parent=11 // pred_region
          _
        $region24: #{tpu_custom_call.1} parent=11 // pred_fallthru
          _
      $region12: #{tpu_custom_call.1} parent=5 // pred_fallthru
        _
      %p222 = scmp.lt.s32.totalorder %s15, 4
      // Predicated region
      $region25: #{tpu_custom_call.1} parent=5 // pred_check
        %p223 = pneg %p222
      $region26: #{tpu_custom_call.1} parent=5 // pred_check_branch
        %225 = sbr.rel (%p223) target = $region28
      $region27: #{tpu_custom_call.1} parent=5 // pred_region
        // Predicated region
        $region29: #{tpu_custom_call.1} parent=27 // pred_check
          %p226 = pneg %p49
        $region30: #{tpu_custom_call.1} parent=27 // pred_check_branch
          %228 = sbr.rel (%p226) target = $region32
        $region31: #{tpu_custom_call.1} parent=27 // pred_region
          %s229 = sand.u32 %s39, 1
          %s230 = sand.u32 %s39, 1
          %s231 = smul.addr %s230, 64
          %s232 = scalar_lea.vmem [#allocation2], %s231
          %s233 = smul.u32 4, %s23
          %s234 = smul.addr %s22, 16
          %s235 = sadd.s32 %s233, %s234
          %s236 = smul.addr %s235, 8
          %s237 = scalar_lea.vmem %s0, %s236
          // Predicated region
          $region33: #{tpu_custom_call.1} parent=31 // pred_check
            _
          $region34: #{tpu_custom_call.1} parent=31 // pred_check_branch
            %239 = sbr.rel (0) target = $region36
          $region35: #{tpu_custom_call.1} parent=31 // pred_region
            // Predicated region
            $region37: #{tpu_custom_call.1} parent=35 // pred_check
              _
            $region38: #{tpu_custom_call.1} parent=35 // pred_check_branch
              %241 = sbr.rel (0) target = $region40
            $region39: #{tpu_custom_call.1} parent=35 // pred_region
              loop: start=0, step=1, limit=1
              $region41: #{tpu_custom_call.1} parent=39 // loop_pre_header
                _
              $region42: #{tpu_custom_call.1} parent=39 // loop_header
                %s243 = sphi 0, %s247
                %p244 = scmp.ge.s32.totalorder %s243, 1
                %s248 = sphi %s237, %s237
                %s249 = sphi %s232, %s232
              $region43: #{tpu_custom_call.1} parent=39 // loop_header_branch
                %246 = sbr.rel (%p244) target = $region47
              $region44: #{tpu_custom_call.1} parent=39 // loop_body
                %v250 = vld [vmem:[%s248] sm:$0xff]
                %251 = vst [vmem:[%s249] sm:$0xff] %v250
                %v252 = vld [vmem:[%s248 + $0x8] sm:$0xff]
                %253 = vst [vmem:[%s249 + $0x8] sm:$0xff] %v252
                %v254 = vld [vmem:[%s248 + $0x10] sm:$0xff]
                %255 = vst [vmem:[%s249 + $0x10] sm:$0xff] %v254
                %v256 = vld [vmem:[%s248 + $0x18] sm:$0xff]
                %257 = vst [vmem:[%s249 + $0x18] sm:$0xff] %v256
                %v258 = vld [vmem:[%s248 + $0x40] sm:$0xff]
                %259 = vst [vmem:[%s249 + $0x20] sm:$0xff] %v258
                %v260 = vld [vmem:[%s248 + $0x48] sm:$0xff]
                %261 = vst [vmem:[%s249 + $0x28] sm:$0xff] %v260
                %v262 = vld [vmem:[%s248 + $0x50] sm:$0xff]
                %263 = vst [vmem:[%s249 + $0x30] sm:$0xff] %v262
                %v264 = vld [vmem:[%s248 + $0x58] sm:$0xff]
                %265 = vst [vmem:[%s249 + $0x38] sm:$0xff] %v264
              $region45: #{tpu_custom_call.1} parent=39 // loop_footer
                %s247 = sadd.s32 1, %s243
              $region46: #{tpu_custom_call.1} parent=39 // loop_footer_branch
                %242 = sbr.rel target = $region42
              $region47: #{tpu_custom_call.1} parent=39 // loop_exit
                _
            $region40: #{tpu_custom_call.1} parent=35 // pred_fallthru
              _
            // Predicated region
            $region48: #{tpu_custom_call.1} parent=35 // pred_check
              _
            $region49: #{tpu_custom_call.1} parent=35 // pred_check_branch
              %267 = sbr.rel target = $region51
            $region50: #{tpu_custom_call.1} parent=35 // pred_region
              _
            $region51: #{tpu_custom_call.1} parent=35 // pred_fallthru
              _
          $region36: #{tpu_custom_call.1} parent=31 // pred_fallthru
            _
          %268 = vnop
        $region32: #{tpu_custom_call.1} parent=27 // pred_fallthru
          _
        // Predicated region
        $region52: #{tpu_custom_call.1} parent=27 // pred_check
          %p269 = pneg %p96
        $region53: #{tpu_custom_call.1} parent=27 // pred_check_branch
          %271 = sbr.rel (%p269) target = $region55
        $region54: #{tpu_custom_call.1} parent=27 // pred_region
          %p272 = scmp.lt.s32.totalorder %s22, 1
          %s273 = scalar_select %p272, %s22, 1
          %s274 = smul.addr %s273, 64
          %s275 = smul.addr %s274, 4
          %s276 = scalar_lea.vmem %s2, %s275
        $region55: #{tpu_custom_call.1} parent=27 // pred_fallthru
          _
        // Predicated region
        $region56: #{tpu_custom_call.1} parent=27 // pred_check
          %p277 = pneg %p122
        $region57: #{tpu_custom_call.1} parent=27 // pred_check_branch
          %279 = sbr.rel (%p277) target = $region59
        $region58: #{tpu_custom_call.1} parent=27 // pred_region
          %p280 = scmp.lt.s32.totalorder %s22, 1
          %s281 = scalar_select %p280, %s22, 1
          %s282 = smul.addr %s281, 8
          %s283 = smul.addr %s282, 4
          %s284 = scalar_lea.vmem %s3, %s283
        $region59: #{tpu_custom_call.1} parent=27 // pred_fallthru
          _
      $region28: #{tpu_custom_call.1} parent=5 // pred_fallthru
        _
      %p285 = scmp.le.s32.totalorder 1, %s15
      %p286 = scmp.lt.s32.totalorder %s15, 5
      %p287 = pnand %p285, %p286
      %p288 = pneg %p287
      // Predicated region
      $region60: #{tpu_custom_call.1} parent=5 // pred_check
        _
      $region61: #{tpu_custom_call.1} parent=5 // pred_check_branch
        %290 = sbr.rel (%p287) target = $region63
      $region62: #{tpu_custom_call.1} parent=5 // pred_region
        %s291 = ssub.s32 %s15, 1
        %s292 = sand.u32 %s42, 1
        %s293 = sand.u32 %s42, 1
        %s294 = smul.addr %s293, 64
        %s295 = scalar_lea.vmem [#allocation2], %s294
        // Predicated region
        $region64: #{tpu_custom_call.1} parent=62 // pred_check
          %p296 = pneg %p55
        $region65: #{tpu_custom_call.1} parent=62 // pred_check_branch
          %298 = sbr.rel (%p296) target = $region67
        $region66: #{tpu_custom_call.1} parent=62 // pred_region
          _
        $region67: #{tpu_custom_call.1} parent=62 // pred_fallthru
          _
        %s299 = sand.u32 %s42, 1
        %s300 = sand.u32 %s42, 1
        %s301 = smul.addr %s300, 64
        %s302 = scalar_lea.vmem [#allocation2], %s301
        %p303 = pneg %p55
        %p304 = pneg %p52
        %p305 = pneg %p76
        %p306 = pneg %p73
        %p307 = scmp.lt.s32.totalorder %s24, 1
        %s308 = scalar_select %p307, %s24, 1
        %s309 = smul.addr %s308, 64
        %s310 = smul.addr %s309, 4
        %s311 = scalar_lea.vmem %s2, %s310
        %p312 = pneg %p102
        %p313 = pneg %p99
        %p314 = scmp.lt.s32.totalorder %s24, 1
        %s315 = scalar_select %p314, %s24, 1
        %s316 = smul.addr %s315, 8
        %s317 = smul.addr %s316, 4
        %s318 = scalar_lea.vmem %s3, %s317
        %p319 = pneg %p128
        %p320 = pneg %p125
        %p321 = pneg %p149
        %p322 = pneg %p146
        %p323 = pneg %p170
        %p324 = pneg %p167
        %p325 = pneg %p198
        %p326 = pneg %p195
        %s327 = sand.u32 %s185, 1
        %s328 = scalar_lea.sflag [#allocation4], %s327
        %s329 = sand.u32 %s185, 1
        %s330 = smul.addr %s329, 64
        %s331 = scalar_lea.vmem [#allocation3], %s330
        %s332 = smul.u32 4, %s25
        %p333 = scmp.lt.s32.totalorder %s24, 1
        %s334 = scalar_select %p333, %s24, 1
        %s335 = smul.addr %s334, 64
        %s336 = smul.addr %s335, 4
        %s337 = scalar_lea.vmem %s2, %s336
        %p338 = scmp.lt.s32.totalorder %s24, 1
        %s339 = scalar_select %p338, %s24, 1
        %s340 = smul.addr %s339, 8
        %s341 = smul.addr %s340, 4
        %s342 = scalar_lea.vmem %s3, %s341
        %s343 = smul.u32 4, %s25
        %v345 = vld [vmem:[%s295] sm:$0xff]
        %v346 = vld [vmem:[%s295 + $0x8] sm:$0xff]
        %v347 = vld [vmem:[%s295 + $0x10] sm:$0xff]
        %v348 = vld [vmem:[%s295 + $0x18] sm:$0xff]
        %v349 = vld [vmem:[%s295 + $0x20] sm:$0xff]
        %v350 = vld [vmem:[%s295 + $0x28] sm:$0xff]
        %v351 = vld [vmem:[%s295 + $0x30] sm:$0xff]
        %v352 = vld [vmem:[%s295 + $0x38] sm:$0xff]
        %v353 = vld [vmem:[%s1] sm:$0xf]
        %v354 = vpack.c.bf16 %v349, %v345
        %v355 = vpack.c.bf16 %v350, %v346
        %v356 = vpack.c.bf16 %v351, %v347
        %v357 = vpack.c.bf16 %v352, %v348
        %vm358 = vcmask 130048
        %v360 = vsel %vm358, %v353, 0
        %362 = vmatprep.subr.bf16.mxu0 0
        %363 = vmatpush1.bf16.msra.mxu0 0
        %364 = vmatprep.subr.bf16.mxu0 0
        %365 = vmatpush1.bf16.msra.mxu0 0
        %366 = vmatprep.subr.bf16.mxu0 0
        %367 = vmatpush1.bf16.msra.mxu0 0
        %368 = vmatprep.subr.bf16.mxu0 0
        %369 = vmatpush1.bf16.msra.mxu0 0
        %370 = vmatprep.subr.bf16.mxu0 0
        %371 = vmatpush1.bf16.msra.mxu0 0
        %372 = vmatprep.subr.bf16.mxu0 0
        %373 = vmatpush1.bf16.msra.mxu0 0
        %374 = vmatprep.subr.bf16.mxu0 0
        %375 = vmatpush1.bf16.msra.mxu0 0
        %376 = vmatprep.subr.bf16.mxu0 %v355
        %377 = vmatpush1.bf16.msra.mxu0 %v354
        %378 = vmatprep.subr.bf16.mxu0 0
        %379 = vmatpush2.bf16.msra.mxu0 0
        %380 = vmatprep.subr.bf16.mxu0 0
        %381 = vmatpush2.bf16.msra.mxu0 0
        %382 = vmatprep.subr.bf16.mxu0 0
        %383 = vmatpush2.bf16.msra.mxu0 0
        %384 = vmatprep.subr.bf16.mxu0 0
        %385 = vmatpush2.bf16.msra.mxu0 0
        %386 = vmatprep.subr.bf16.mxu0 0
        %387 = vmatpush2.bf16.msra.mxu0 0
        %388 = vmatprep.subr.bf16.mxu0 0
        %389 = vmatpush2.bf16.msra.mxu0 0
        %390 = vmatprep.subr.bf16.mxu0 0
        %391 = vmatpush2.bf16.msra.mxu0 0
        %392 = vmatprep.subr.bf16.mxu0 0
        %393 = vmatpush2.bf16.msra.mxu0 0
        %394 = vmatprep.mubr.bf16.mxu0 0
        %395 = vmatmul.mubr.bf16.gmra.mxu0 %v360
        %v396 = vpop.f32.mrf.mxu0
        %v397 = vadd.f32 0.0, %v396
        %v398 = vpop.f32.mrf.mxu0
        %v399 = vadd.f32 0.0, %v398
        %v400 = vpop.f32.mrf.mxu0
        %v401 = vpop.f32.mrf.mxu0
        %402 = vdwg.mxu0
        %403 = vmatprep.subr.bf16.mxu0 0
        %404 = vmatpush1.bf16.msra.mxu0 0
        %405 = vmatprep.subr.bf16.mxu0 0
        %406 = vmatpush1.bf16.msra.mxu0 0
        %407 = vmatprep.subr.bf16.mxu0 0
        %408 = vmatpush1.bf16.msra.mxu0 0
        %409 = vmatprep.subr.bf16.mxu0 0
        %410 = vmatpush1.bf16.msra.mxu0 0
        %411 = vmatprep.subr.bf16.mxu0 0
        %412 = vmatpush1.bf16.msra.mxu0 0
        %413 = vmatprep.subr.bf16.mxu0 0
        %414 = vmatpush1.bf16.msra.mxu0 0
        %415 = vmatprep.subr.bf16.mxu0 0
        %416 = vmatpush1.bf16.msra.mxu0 0
        %417 = vmatprep.subr.bf16.mxu0 %v357
        %418 = vmatpush1.bf16.msra.mxu0 %v356
        %419 = vmatprep.subr.bf16.mxu0 0
        %420 = vmatpush2.bf16.msra.mxu0 0
        %421 = vmatprep.subr.bf16.mxu0 0
        %422 = vmatpush2.bf16.msra.mxu0 0
        %423 = vmatprep.subr.bf16.mxu0 0
        %424 = vmatpush2.bf16.msra.mxu0 0
        %425 = vmatprep.subr.bf16.mxu0 0
        %426 = vmatpush2.bf16.msra.mxu0 0
        %427 = vmatprep.subr.bf16.mxu0 0
        %428 = vmatpush2.bf16.msra.mxu0 0
        %429 = vmatprep.subr.bf16.mxu0 0
        %430 = vmatpush2.bf16.msra.mxu0 0
        %431 = vmatprep.subr.bf16.mxu0 0
        %432 = vmatpush2.bf16.msra.mxu0 0
        %433 = vmatprep.subr.bf16.mxu0 0
        %434 = vmatpush2.bf16.msra.mxu0 0
        %435 = vmatprep.mubr.bf16.mxu0 0
        %436 = vmatmul.mubr.bf16.gmra.mxu0 %v360
        %v437 = vpop.f32.mrf.mxu0
        %v438 = vadd.f32 0.0, %v437
        %v439 = vpop.f32.mrf.mxu0
        %v440 = vadd.f32 0.0, %v439
        %v441 = vpop.f32.mrf.mxu0
        %v442 = vpop.f32.mrf.mxu0
        %443 = vdwg.mxu0
        %v444 = vld [vmem:[%s337] sm:$0xf]
        %v445 = vld [vmem:[%s337 + $0x4] sm:$0xf]
        %v446 = vld [vmem:[%s337 + $0x8] sm:$0xf]
        %v447 = vld [vmem:[%s337 + $0xc] sm:$0xf]
        %v448 = vld [vmem:[%s337 + $0x10] sm:$0xf]
        %v449 = vld [vmem:[%s337 + $0x14] sm:$0xf]
        %v450 = vld [vmem:[%s337 + $0x18] sm:$0xf]
        %v451 = vld [vmem:[%s337 + $0x1c] sm:$0xf]
        %v452 = vld [vmem:[%s337 + $0x20] sm:$0xf]
        %v453 = vld [vmem:[%s337 + $0x24] sm:$0xf]
        %v454 = vld [vmem:[%s337 + $0x28] sm:$0xf]
        %v455 = vld [vmem:[%s337 + $0x2c] sm:$0xf]
        %v456 = vld [vmem:[%s337 + $0x30] sm:$0xf]
        %v457 = vld [vmem:[%s337 + $0x34] sm:$0xf]
        %v458 = vld [vmem:[%s337 + $0x38] sm:$0xf]
        %v459 = vld [vmem:[%s337 + $0x3c] sm:$0xf]
        %v460 = vld [vmem:[%s337 + $0x40] sm:$0xf]
        %v461 = vld [vmem:[%s337 + $0x44] sm:$0xf]
        %v462 = vld [vmem:[%s337 + $0x48] sm:$0xf]
        %v463 = vld [vmem:[%s337 + $0x4c] sm:$0xf]
        %v464 = vld [vmem:[%s337 + $0x50] sm:$0xf]
        %v465 = vld [vmem:[%s337 + $0x54] sm:$0xf]
        %v466 = vld [vmem:[%s337 + $0x58] sm:$0xf]
        %v467 = vld [vmem:[%s337 + $0x5c] sm:$0xf]
        %v468 = vld [vmem:[%s337 + $0x60] sm:$0xf]
        %v469 = vld [vmem:[%s337 + $0x64] sm:$0xf]
        %v470 = vld [vmem:[%s337 + $0x68] sm:$0xf]
        %v471 = vld [vmem:[%s337 + $0x6c] sm:$0xf]
        %v472 = vld [vmem:[%s337 + $0x70] sm:$0xf]
        %v473 = vld [vmem:[%s337 + $0x74] sm:$0xf]
        %v474 = vld [vmem:[%s337 + $0x78] sm:$0xf]
        %v475 = vld [vmem:[%s337 + $0x7c] sm:$0xf]
        %v476 = vld [vmem:[%s337 + $0x80] sm:$0xf]
        %v477 = vld [vmem:[%s337 + $0x84] sm:$0xf]
        %v478 = vld [vmem:[%s337 + $0x88] sm:$0xf]
        %v479 = vld [vmem:[%s337 + $0x8c] sm:$0xf]
        %v480 = vld [vmem:[%s337 + $0x90] sm:$0xf]
        %v481 = vld [vmem:[%s337 + $0x94] sm:$0xf]
        %v482 = vld [vmem:[%s337 + $0x98] sm:$0xf]
        %v483 = vld [vmem:[%s337 + $0x9c] sm:$0xf]
        %v484 = vld [vmem:[%s337 + $0xa0] sm:$0xf]
        %v485 = vld [vmem:[%s337 + $0xa4] sm:$0xf]
        %v486 = vld [vmem:[%s337 + $0xa8] sm:$0xf]
        %v487 = vld [vmem:[%s337 + $0xac] sm:$0xf]
        %v488 = vld [vmem:[%s337 + $0xb0] sm:$0xf]
        %v489 = vld [vmem:[%s337 + $0xb4] sm:$0xf]
        %v490 = vld [vmem:[%s337 + $0xb8] sm:$0xf]
        %v491 = vld [vmem:[%s337 + $0xbc] sm:$0xf]
        %v492 = vld [vmem:[%s337 + $0xc0] sm:$0xf]
        %v493 = vld [vmem:[%s337 + $0xc4] sm:$0xf]
        %v494 = vld [vmem:[%s337 + $0xc8] sm:$0xf]
        %v495 = vld [vmem:[%s337 + $0xcc] sm:$0xf]
        %v496 = vld [vmem:[%s337 + $0xd0] sm:$0xf]
        %v497 = vld [vmem:[%s337 + $0xd4] sm:$0xf]
        %v498 = vld [vmem:[%s337 + $0xd8] sm:$0xf]
        %v499 = vld [vmem:[%s337 + $0xdc] sm:$0xf]
        %v500 = vld [vmem:[%s337 + $0xe0] sm:$0xf]
        %v501 = vld [vmem:[%s337 + $0xe4] sm:$0xf]
        %v502 = vld [vmem:[%s337 + $0xe8] sm:$0xf]
        %v503 = vld [vmem:[%s337 + $0xec] sm:$0xf]
        %v504 = vld [vmem:[%s337 + $0xf0] sm:$0xf]
        %v505 = vld [vmem:[%s337 + $0xf4] sm:$0xf]
        %v506 = vld [vmem:[%s337 + $0xf8] sm:$0xf]
        %v507 = vld [vmem:[%s337 + $0xfc] sm:$0xf]
        %v508 = vpack.c.bf16 %v397, %v397
        %v509 = vpack.c.bf16 %v399, %v399
        %v510 = vpack.c.bf16 %v438, %v438
        %v511 = vpack.c.bf16 %v440, %v440
        %v576 = vunpack.c.l.b16 %v444
        %v577 = vunpack.c.l.b16 %v445
        %v578 = vunpack.c.l.b16 %v446
        %v579 = vunpack.c.l.b16 %v447
        %v580 = vunpack.c.l.b16 %v448
        %v581 = vunpack.c.l.b16 %v449
        %v582 = vunpack.c.l.b16 %v450
        %v583 = vunpack.c.l.b16 %v451
        %v584 = vunpack.c.l.b16 %v452
        %v585 = vunpack.c.l.b16 %v453
        %v586 = vunpack.c.l.b16 %v454
        %v587 = vunpack.c.l.b16 %v455
        %v588 = vunpack.c.l.b16 %v456
        %v589 = vunpack.c.l.b16 %v457
        %v590 = vunpack.c.l.b16 %v458
        %v591 = vunpack.c.l.b16 %v459
        %v592 = vunpack.c.l.b16 %v460
        %v593 = vunpack.c.l.b16 %v461
        %v594 = vunpack.c.l.b16 %v462
        %v595 = vunpack.c.l.b16 %v463
        %v596 = vunpack.c.l.b16 %v464
        %v597 = vunpack.c.l.b16 %v465
        %v598 = vunpack.c.l.b16 %v466
        %v599 = vunpack.c.l.b16 %v467
        %v600 = vunpack.c.l.b16 %v468
        %v601 = vunpack.c.l.b16 %v469
        %v602 = vunpack.c.l.b16 %v470
        %v603 = vunpack.c.l.b16 %v471
        %v604 = vunpack.c.l.b16 %v472
        %v605 = vunpack.c.l.b16 %v473
        %v606 = vunpack.c.l.b16 %v474
        %v607 = vunpack.c.l.b16 %v475
        %v608 = vunpack.c.l.b16 %v476
        %v609 = vunpack.c.l.b16 %v477
        %v610 = vunpack.c.l.b16 %v478
        %v611 = vunpack.c.l.b16 %v479
        %v612 = vunpack.c.l.b16 %v480
        %v613 = vunpack.c.l.b16 %v481
        %v614 = vunpack.c.l.b16 %v482
        %v615 = vunpack.c.l.b16 %v483
        %v616 = vunpack.c.l.b16 %v484
        %v617 = vunpack.c.l.b16 %v485
        %v618 = vunpack.c.l.b16 %v486
        %v619 = vunpack.c.l.b16 %v487
        %v620 = vunpack.c.l.b16 %v488
        %v621 = vunpack.c.l.b16 %v489
        %v622 = vunpack.c.l.b16 %v490
        %v623 = vunpack.c.l.b16 %v491
        %v624 = vunpack.c.l.b16 %v492
        %v625 = vunpack.c.l.b16 %v493
        %v626 = vunpack.c.l.b16 %v494
        %v627 = vunpack.c.l.b16 %v495
        %v628 = vunpack.c.l.b16 %v496
        %v629 = vunpack.c.l.b16 %v497
        %v630 = vunpack.c.l.b16 %v498
        %v631 = vunpack.c.l.b16 %v499
        %v632 = vunpack.c.l.b16 %v500
        %v633 = vunpack.c.l.b16 %v501
        %v634 = vunpack.c.l.b16 %v502
        %v635 = vunpack.c.l.b16 %v503
        %v636 = vunpack.c.l.b16 %v504
        %v637 = vunpack.c.l.b16 %v505
        %v638 = vunpack.c.l.b16 %v506
        %v639 = vunpack.c.l.b16 %v507
        %v640 = vpack.c.b16 %v577, %v576
        %v641 = vpack.c.b16 %v579, %v578
        %v642 = vpack.c.b16 %v581, %v580
        %v643 = vpack.c.b16 %v583, %v582
        %v644 = vpack.c.b16 %v585, %v584
        %v645 = vpack.c.b16 %v587, %v586
        %v646 = vpack.c.b16 %v589, %v588
        %v647 = vpack.c.b16 %v591, %v590
        %v648 = vpack.c.b16 %v593, %v592
        %v649 = vpack.c.b16 %v595, %v594
        %v650 = vpack.c.b16 %v597, %v596
        %v651 = vpack.c.b16 %v599, %v598
        %v652 = vpack.c.b16 %v601, %v600
        %v653 = vpack.c.b16 %v603, %v602
        %v654 = vpack.c.b16 %v605, %v604
        %v655 = vpack.c.b16 %v607, %v606
        %v656 = vpack.c.b16 %v609, %v608
        %v657 = vpack.c.b16 %v611, %v610
        %v658 = vpack.c.b16 %v613, %v612
        %v659 = vpack.c.b16 %v615, %v614
        %v660 = vpack.c.b16 %v617, %v616
        %v661 = vpack.c.b16 %v619, %v618
        %v662 = vpack.c.b16 %v621, %v620
        %v663 = vpack.c.b16 %v623, %v622
        %v664 = vpack.c.b16 %v625, %v624
        %v665 = vpack.c.b16 %v627, %v626
        %v666 = vpack.c.b16 %v629, %v628
        %v667 = vpack.c.b16 %v631, %v630
        %v668 = vpack.c.b16 %v633, %v632
        %v669 = vpack.c.b16 %v635, %v634
        %v670 = vpack.c.b16 %v637, %v636
        %v671 = vpack.c.b16 %v639, %v638
        %vm672 = vcmask 64512
        %v674 = vsel %vm672, %v640, 0
        %v677 = vsel %vm672, %v641, 0
        %v680 = vsel %vm672, %v642, 0
        %v683 = vsel %vm672, %v643, 0
        %v686 = vsel %vm672, %v644, 0
        %v689 = vsel %vm672, %v645, 0
        %v692 = vsel %vm672, %v646, 0
        %v695 = vsel %vm672, %v647, 0
        %v698 = vsel %vm672, %v648, 0
        %v701 = vsel %vm672, %v649, 0
        %v704 = vsel %vm672, %v650, 0
        %v707 = vsel %vm672, %v651, 0
        %v710 = vsel %vm672, %v652, 0
        %v713 = vsel %vm672, %v653, 0
        %v716 = vsel %vm672, %v654, 0
        %v719 = vsel %vm672, %v655, 0
        %v722 = vsel %vm672, %v656, 0
        %v725 = vsel %vm672, %v657, 0
        %v728 = vsel %vm672, %v658, 0
        %v731 = vsel %vm672, %v659, 0
        %v734 = vsel %vm672, %v660, 0
        %v737 = vsel %vm672, %v661, 0
        %v740 = vsel %vm672, %v662, 0
        %v743 = vsel %vm672, %v663, 0
        %v746 = vsel %vm672, %v664, 0
        %v749 = vsel %vm672, %v665, 0
        %v752 = vsel %vm672, %v666, 0
        %v755 = vsel %vm672, %v667, 0
        %v758 = vsel %vm672, %v668, 0
        %v761 = vsel %vm672, %v669, 0
        %v764 = vsel %vm672, %v670, 0
        %v767 = vsel %vm672, %v671, 0
        %vm769 = vcmask 1043456
        %v771 = vsel %vm769, %v508, 0
        %v774 = vsel %vm769, %v509, 0
        %v777 = vsel %vm769, %v510, 0
        %v780 = vsel %vm769, %v511, 0
        %782 = vmatprep.subr.bf16.mxu0 0
        %783 = vmatpush1.bf16.msra.mxu0 0
        %784 = vmatprep.subr.bf16.mxu0 0
        %785 = vmatpush1.bf16.msra.mxu0 0
        %786 = vmatprep.subr.bf16.mxu0 0
        %787 = vmatpush1.bf16.msra.mxu0 0
        %788 = vmatprep.subr.bf16.mxu0 0
        %789 = vmatpush1.bf16.msra.mxu0 0
        %790 = vmatprep.subr.bf16.mxu0 0
        %791 = vmatpush1.bf16.msra.mxu0 0
        %792 = vmatprep.subr.bf16.mxu0 0
        %793 = vmatpush1.bf16.msra.mxu0 0
        %794 = vmatprep.subr.bf16.mxu0 0
        %795 = vmatpush1.bf16.msra.mxu0 0
        %796 = vmatprep.subr.bf16.mxu0 %v774
        %797 = vmatpush1.bf16.msra.mxu0 %v771
        %798 = vmatprep.subr.bf16.mxu0 0
        %799 = vmatpush2.bf16.msra.mxu0 0
        %800 = vmatprep.subr.bf16.mxu0 0
        %801 = vmatpush2.bf16.msra.mxu0 0
        %802 = vmatprep.subr.bf16.mxu0 0
        %803 = vmatpush2.bf16.msra.mxu0 0
        %804 = vmatprep.subr.bf16.mxu0 0
        %805 = vmatpush2.bf16.msra.mxu0 0
        %806 = vmatprep.subr.bf16.mxu0 0
        %807 = vmatpush2.bf16.msra.mxu0 0
        %808 = vmatprep.subr.bf16.mxu0 0
        %809 = vmatpush2.bf16.msra.mxu0 0
        %810 = vmatprep.subr.bf16.mxu0 0
        %811 = vmatpush2.bf16.msra.mxu0 0
        %812 = vmatprep.subr.bf16.mxu0 0
        %813 = vmatpush2.bf16.msra.mxu0 0
        %814 = vmatprep.mubr.bf16.mxu0 0
        %815 = vmatmul.mubr.bf16.gmra.mxu0 %v674
        %v816 = vpop.f32.mrf.mxu0
        %v817 = vadd.f32 0.0, %v816
        %v818 = vpop.f32.mrf.mxu0
        %v819 = vadd.f32 0.0, %v818
        %v820 = vpop.f32.mrf.mxu0
        %v821 = vadd.f32 0.0, %v820
        %v822 = vpop.f32.mrf.mxu0
        %v823 = vadd.f32 0.0, %v822
        %824 = vmatprep.mubr.bf16.mxu0 0
        %825 = vmatmul.mubr.bf16.gmra.mxu0 %v677
        %v826 = vpop.f32.mrf.mxu0
        %v827 = vadd.f32 0.0, %v826
        %v828 = vpop.f32.mrf.mxu0
        %v829 = vadd.f32 0.0, %v828
        %v830 = vpop.f32.mrf.mxu0
        %v831 = vadd.f32 0.0, %v830
        %v832 = vpop.f32.mrf.mxu0
        %v833 = vadd.f32 0.0, %v832
        %834 = vmatprep.mubr.bf16.mxu0 0
        %835 = vmatmul.mubr.bf16.gmra.mxu0 %v680
        %v836 = vpop.f32.mrf.mxu0
        %v837 = vadd.f32 0.0, %v836
        %v838 = vpop.f32.mrf.mxu0
        %v839 = vadd.f32 0.0, %v838
        %v840 = vpop.f32.mrf.mxu0
        %v841 = vadd.f32 0.0, %v840
        %v842 = vpop.f32.mrf.mxu0
        %v843 = vadd.f32 0.0, %v842
        %844 = vmatprep.mubr.bf16.mxu0 0
        %845 = vmatmul.mubr.bf16.gmra.mxu0 %v683
        %v846 = vpop.f32.mrf.mxu0
        %v847 = vadd.f32 0.0, %v846
        %v848 = vpop.f32.mrf.mxu0
        %v849 = vadd.f32 0.0, %v848
        %v850 = vpop.f32.mrf.mxu0
        %v851 = vadd.f32 0.0, %v850
        %v852 = vpop.f32.mrf.mxu0
        %v853 = vadd.f32 0.0, %v852
        %854 = vmatprep.mubr.bf16.mxu0 0
        %855 = vmatmul.mubr.bf16.gmra.mxu0 %v686
        %v856 = vpop.f32.mrf.mxu0
        %v857 = vadd.f32 0.0, %v856
        %v858 = vpop.f32.mrf.mxu0
        %v859 = vadd.f32 0.0, %v858
        %v860 = vpop.f32.mrf.mxu0
        %v861 = vadd.f32 0.0, %v860
        %v862 = vpop.f32.mrf.mxu0
        %v863 = vadd.f32 0.0, %v862
        %864 = vmatprep.mubr.bf16.mxu0 0
        %865 = vmatmul.mubr.bf16.gmra.mxu0 %v689
        %v866 = vpop.f32.mrf.mxu0
        %v867 = vadd.f32 0.0, %v866
        %v868 = vpop.f32.mrf.mxu0
        %v869 = vadd.f32 0.0, %v868
        %v870 = vpop.f32.mrf.mxu0
        %v871 = vadd.f32 0.0, %v870
        %v872 = vpop.f32.mrf.mxu0
        %v873 = vadd.f32 0.0, %v872
        %874 = vmatprep.mubr.bf16.mxu0 0
        %875 = vmatmul.mubr.bf16.gmra.mxu0 %v692
        %v876 = vpop.f32.mrf.mxu0
        %v877 = vadd.f32 0.0, %v876
        %v878 = vpop.f32.mrf.mxu0
        %v879 = vadd.f32 0.0, %v878
        %v880 = vpop.f32.mrf.mxu0
        %v881 = vadd.f32 0.0, %v880
        %v882 = vpop.f32.mrf.mxu0
        %v883 = vadd.f32 0.0, %v882
        %884 = vmatprep.mubr.bf16.mxu0 0
        %885 = vmatmul.mubr.bf16.gmra.mxu0 %v695
        %v886 = vpop.f32.mrf.mxu0
        %v887 = vadd.f32 0.0, %v886
        %v888 = vpop.f32.mrf.mxu0
        %v889 = vadd.f32 0.0, %v888
        %v890 = vpop.f32.mrf.mxu0
        %v891 = vadd.f32 0.0, %v890
        %v892 = vpop.f32.mrf.mxu0
        %v893 = vadd.f32 0.0, %v892
        %894 = vmatprep.mubr.bf16.mxu0 0
        %895 = vmatmul.mubr.bf16.gmra.mxu0 %v698
        %v896 = vpop.f32.mrf.mxu0
        %v897 = vadd.f32 0.0, %v896
        %v898 = vpop.f32.mrf.mxu0
        %v899 = vadd.f32 0.0, %v898
        %v900 = vpop.f32.mrf.mxu0
        %v901 = vadd.f32 0.0, %v900
        %v902 = vpop.f32.mrf.mxu0
        %v903 = vadd.f32 0.0, %v902
        %904 = vmatprep.mubr.bf16.mxu0 0
        %905 = vmatmul.mubr.bf16.gmra.mxu0 %v701
        %v906 = vpop.f32.mrf.mxu0
        %v907 = vadd.f32 0.0, %v906
        %v908 = vpop.f32.mrf.mxu0
        %v909 = vadd.f32 0.0, %v908
        %v910 = vpop.f32.mrf.mxu0
        %v911 = vadd.f32 0.0, %v910
        %v912 = vpop.f32.mrf.mxu0
        %v913 = vadd.f32 0.0, %v912
        %914 = vmatprep.mubr.bf16.mxu0 0
        %915 = vmatmul.mubr.bf16.gmra.mxu0 %v704
        %v916 = vpop.f32.mrf.mxu0
        %v917 = vadd.f32 0.0, %v916
        %v918 = vpop.f32.mrf.mxu0
        %v919 = vadd.f32 0.0, %v918
        %v920 = vpop.f32.mrf.mxu0
        %v921 = vadd.f32 0.0, %v920
        %v922 = vpop.f32.mrf.mxu0
        %v923 = vadd.f32 0.0, %v922
        %924 = vmatprep.mubr.bf16.mxu0 0
        %925 = vmatmul.mubr.bf16.gmra.mxu0 %v707
        %v926 = vpop.f32.mrf.mxu0
        %v927 = vadd.f32 0.0, %v926
        %v928 = vpop.f32.mrf.mxu0
        %v929 = vadd.f32 0.0, %v928
        %v930 = vpop.f32.mrf.mxu0
        %v931 = vadd.f32 0.0, %v930
        %v932 = vpop.f32.mrf.mxu0
        %v933 = vadd.f32 0.0, %v932
        %934 = vmatprep.mubr.bf16.mxu0 0
        %935 = vmatmul.mubr.bf16.gmra.mxu0 %v710
        %v936 = vpop.f32.mrf.mxu0
        %v937 = vadd.f32 0.0, %v936
        %v938 = vpop.f32.mrf.mxu0
        %v939 = vadd.f32 0.0, %v938
        %v940 = vpop.f32.mrf.mxu0
        %v941 = vadd.f32 0.0, %v940
        %v942 = vpop.f32.mrf.mxu0
        %v943 = vadd.f32 0.0, %v942
        %944 = vmatprep.mubr.bf16.mxu0 0
        %945 = vmatmul.mubr.bf16.gmra.mxu0 %v713
        %v946 = vpop.f32.mrf.mxu0
        %v947 = vadd.f32 0.0, %v946
        %v948 = vpop.f32.mrf.mxu0
        %v949 = vadd.f32 0.0, %v948
        %v950 = vpop.f32.mrf.mxu0
        %v951 = vadd.f32 0.0, %v950
        %v952 = vpop.f32.mrf.mxu0
        %v953 = vadd.f32 0.0, %v952
        %954 = vmatprep.mubr.bf16.mxu0 0
        %955 = vmatmul.mubr.bf16.gmra.mxu0 %v716
        %v956 = vpop.f32.mrf.mxu0
        %v957 = vadd.f32 0.0, %v956
        %v958 = vpop.f32.mrf.mxu0
        %v959 = vadd.f32 0.0, %v958
        %v960 = vpop.f32.mrf.mxu0
        %v961 = vadd.f32 0.0, %v960
        %v962 = vpop.f32.mrf.mxu0
        %v963 = vadd.f32 0.0, %v962
        %964 = vmatprep.mubr.bf16.mxu0 0
        %965 = vmatmul.mubr.bf16.gmra.mxu0 %v719
        %v966 = vpop.f32.mrf.mxu0
        %v967 = vadd.f32 0.0, %v966
        %v968 = vpop.f32.mrf.mxu0
        %v969 = vadd.f32 0.0, %v968
        %v970 = vpop.f32.mrf.mxu0
        %v971 = vadd.f32 0.0, %v970
        %v972 = vpop.f32.mrf.mxu0
        %v973 = vadd.f32 0.0, %v972
        %974 = vmatprep.mubr.bf16.mxu0 0
        %975 = vmatmul.mubr.bf16.gmra.mxu0 %v722
        %v976 = vpop.f32.mrf.mxu0
        %v977 = vadd.f32 0.0, %v976
        %v978 = vpop.f32.mrf.mxu0
        %v979 = vadd.f32 0.0, %v978
        %v980 = vpop.f32.mrf.mxu0
        %v981 = vadd.f32 0.0, %v980
        %v982 = vpop.f32.mrf.mxu0
        %v983 = vadd.f32 0.0, %v982
        %984 = vmatprep.mubr.bf16.mxu0 0
        %985 = vmatmul.mubr.bf16.gmra.mxu0 %v725
        %v986 = vpop.f32.mrf.mxu0
        %v987 = vadd.f32 0.0, %v986
        %v988 = vpop.f32.mrf.mxu0
        %v989 = vadd.f32 0.0, %v988
        %v990 = vpop.f32.mrf.mxu0
        %v991 = vadd.f32 0.0, %v990
        %v992 = vpop.f32.mrf.mxu0
        %v993 = vadd.f32 0.0, %v992
        %994 = vmatprep.mubr.bf16.mxu0 0
        %995 = vmatmul.mubr.bf16.gmra.mxu0 %v728
        %v996 = vpop.f32.mrf.mxu0
        %v997 = vadd.f32 0.0, %v996
        %v998 = vpop.f32.mrf.mxu0
        %v999 = vadd.f32 0.0, %v998
        %v1000 = vpop.f32.mrf.mxu0
        %v1001 = vadd.f32 0.0, %v1000
        %v1002 = vpop.f32.mrf.mxu0
        %v1003 = vadd.f32 0.0, %v1002
        %1004 = vmatprep.mubr.bf16.mxu0 0
        %1005 = vmatmul.mubr.bf16.gmra.mxu0 %v731
        %v1006 = vpop.f32.mrf.mxu0
        %v1007 = vadd.f32 0.0, %v1006
        %v1008 = vpop.f32.mrf.mxu0
        %v1009 = vadd.f32 0.0, %v1008
        %v1010 = vpop.f32.mrf.mxu0
        %v1011 = vadd.f32 0.0, %v1010
        %v1012 = vpop.f32.mrf.mxu0
        %v1013 = vadd.f32 0.0, %v1012
        %1014 = vmatprep.mubr.bf16.mxu0 0
        %1015 = vmatmul.mubr.bf16.gmra.mxu0 %v734
        %v1016 = vpop.f32.mrf.mxu0
        %v1017 = vadd.f32 0.0, %v1016
        %v1018 = vpop.f32.mrf.mxu0
        %v1019 = vadd.f32 0.0, %v1018
        %v1020 = vpop.f32.mrf.mxu0
        %v1021 = vadd.f32 0.0, %v1020
        %v1022 = vpop.f32.mrf.mxu0
        %v1023 = vadd.f32 0.0, %v1022
        %1024 = vmatprep.mubr.bf16.mxu0 0
        %1025 = vmatmul.mubr.bf16.gmra.mxu0 %v737
        %v1026 = vpop.f32.mrf.mxu0
        %v1027 = vadd.f32 0.0, %v1026
        %v1028 = vpop.f32.mrf.mxu0
        %v1029 = vadd.f32 0.0, %v1028
        %v1030 = vpop.f32.mrf.mxu0
        %v1031 = vadd.f32 0.0, %v1030
        %v1032 = vpop.f32.mrf.mxu0
        %v1033 = vadd.f32 0.0, %v1032
        %1034 = vmatprep.mubr.bf16.mxu0 0
        %1035 = vmatmul.mubr.bf16.gmra.mxu0 %v740
        %v1036 = vpop.f32.mrf.mxu0
        %v1037 = vadd.f32 0.0, %v1036
        %v1038 = vpop.f32.mrf.mxu0
        %v1039 = vadd.f32 0.0, %v1038
        %v1040 = vpop.f32.mrf.mxu0
        %v1041 = vadd.f32 0.0, %v1040
        %v1042 = vpop.f32.mrf.mxu0
        %v1043 = vadd.f32 0.0, %v1042
        %1044 = vmatprep.mubr.bf16.mxu0 0
        %1045 = vmatmul.mubr.bf16.gmra.mxu0 %v743
        %v1046 = vpop.f32.mrf.mxu0
        %v1047 = vadd.f32 0.0, %v1046
        %v1048 = vpop.f32.mrf.mxu0
        %v1049 = vadd.f32 0.0, %v1048
        %v1050 = vpop.f32.mrf.mxu0
        %v1051 = vadd.f32 0.0, %v1050
        %v1052 = vpop.f32.mrf.mxu0
        %v1053 = vadd.f32 0.0, %v1052
        %1054 = vmatprep.mubr.bf16.mxu0 0
        %1055 = vmatmul.mubr.bf16.gmra.mxu0 %v746
        %v1056 = vpop.f32.mrf.mxu0
        %v1057 = vadd.f32 0.0, %v1056
        %v1058 = vpop.f32.mrf.mxu0
        %v1059 = vadd.f32 0.0, %v1058
        %v1060 = vpop.f32.mrf.mxu0
        %v1061 = vadd.f32 0.0, %v1060
        %v1062 = vpop.f32.mrf.mxu0
        %v1063 = vadd.f32 0.0, %v1062
        %1064 = vmatprep.mubr.bf16.mxu0 0
        %1065 = vmatmul.mubr.bf16.gmra.mxu0 %v749
        %v1066 = vpop.f32.mrf.mxu0
        %v1067 = vadd.f32 0.0, %v1066
        %v1068 = vpop.f32.mrf.mxu0
        %v1069 = vadd.f32 0.0, %v1068
        %v1070 = vpop.f32.mrf.mxu0
        %v1071 = vadd.f32 0.0, %v1070
        %v1072 = vpop.f32.mrf.mxu0
        %v1073 = vadd.f32 0.0, %v1072
        %1074 = vmatprep.mubr.bf16.mxu0 0
        %1075 = vmatmul.mubr.bf16.gmra.mxu0 %v752
        %v1076 = vpop.f32.mrf.mxu0
        %v1077 = vadd.f32 0.0, %v1076
        %v1078 = vpop.f32.mrf.mxu0
        %v1079 = vadd.f32 0.0, %v1078
        %v1080 = vpop.f32.mrf.mxu0
        %v1081 = vadd.f32 0.0, %v1080
        %v1082 = vpop.f32.mrf.mxu0
        %v1083 = vadd.f32 0.0, %v1082
        %1084 = vmatprep.mubr.bf16.mxu0 0
        %1085 = vmatmul.mubr.bf16.gmra.mxu0 %v755
        %v1086 = vpop.f32.mrf.mxu0
        %v1087 = vadd.f32 0.0, %v1086
        %v1088 = vpop.f32.mrf.mxu0
        %v1089 = vadd.f32 0.0, %v1088
        %v1090 = vpop.f32.mrf.mxu0
        %v1091 = vadd.f32 0.0, %v1090
        %v1092 = vpop.f32.mrf.mxu0
        %v1093 = vadd.f32 0.0, %v1092
        %1094 = vmatprep.mubr.bf16.mxu0 0
        %1095 = vmatmul.mubr.bf16.gmra.mxu0 %v758
        %v1096 = vpop.f32.mrf.mxu0
        %v1097 = vadd.f32 0.0, %v1096
        %v1098 = vpop.f32.mrf.mxu0
        %v1099 = vadd.f32 0.0, %v1098
        %v1100 = vpop.f32.mrf.mxu0
        %v1101 = vadd.f32 0.0, %v1100
        %v1102 = vpop.f32.mrf.mxu0
        %v1103 = vadd.f32 0.0, %v1102
        %1104 = vmatprep.mubr.bf16.mxu0 0
        %1105 = vmatmul.mubr.bf16.gmra.mxu0 %v761
        %v1106 = vpop.f32.mrf.mxu0
        %v1107 = vadd.f32 0.0, %v1106
        %v1108 = vpop.f32.mrf.mxu0
        %v1109 = vadd.f32 0.0, %v1108
        %v1110 = vpop.f32.mrf.mxu0
        %v1111 = vadd.f32 0.0, %v1110
        %v1112 = vpop.f32.mrf.mxu0
        %v1113 = vadd.f32 0.0, %v1112
        %1114 = vmatprep.mubr.bf16.mxu0 0
        %1115 = vmatmul.mubr.bf16.gmra.mxu0 %v764
        %v1116 = vpop.f32.mrf.mxu0
        %v1117 = vadd.f32 0.0, %v1116
        %v1118 = vpop.f32.mrf.mxu0
        %v1119 = vadd.f32 0.0, %v1118
        %v1120 = vpop.f32.mrf.mxu0
        %v1121 = vadd.f32 0.0, %v1120
        %v1122 = vpop.f32.mrf.mxu0
        %v1123 = vadd.f32 0.0, %v1122
        %1124 = vmatprep.mubr.bf16.mxu0 0
        %1125 = vmatmul.mubr.bf16.gmra.mxu0 %v767
        %v1126 = vpop.f32.mrf.mxu0
        %v1127 = vadd.f32 0.0, %v1126
        %v1128 = vpop.f32.mrf.mxu0
        %v1129 = vadd.f32 0.0, %v1128
        %v1130 = vpop.f32.mrf.mxu0
        %v1131 = vadd.f32 0.0, %v1130
        %v1132 = vpop.f32.mrf.mxu0
        %v1133 = vadd.f32 0.0, %v1132
        %1134 = vdwg.mxu0
        %1135 = vmatprep.subr.bf16.mxu0 0
        %1136 = vmatpush1.bf16.msra.mxu0 0
        %1137 = vmatprep.subr.bf16.mxu0 0
        %1138 = vmatpush1.bf16.msra.mxu0 0
        %1139 = vmatprep.subr.bf16.mxu0 0
        %1140 = vmatpush1.bf16.msra.mxu0 0
        %1141 = vmatprep.subr.bf16.mxu0 0
        %1142 = vmatpush1.bf16.msra.mxu0 0
        %1143 = vmatprep.subr.bf16.mxu0 0
        %1144 = vmatpush1.bf16.msra.mxu0 0
        %1145 = vmatprep.subr.bf16.mxu0 0
        %1146 = vmatpush1.bf16.msra.mxu0 0
        %1147 = vmatprep.subr.bf16.mxu0 0
        %1148 = vmatpush1.bf16.msra.mxu0 0
        %1149 = vmatprep.subr.bf16.mxu0 %v780
        %1150 = vmatpush1.bf16.msra.mxu0 %v777
        %1151 = vmatprep.subr.bf16.mxu0 0
        %1152 = vmatpush2.bf16.msra.mxu0 0
        %1153 = vmatprep.subr.bf16.mxu0 0
        %1154 = vmatpush2.bf16.msra.mxu0 0
        %1155 = vmatprep.subr.bf16.mxu0 0
        %1156 = vmatpush2.bf16.msra.mxu0 0
        %1157 = vmatprep.subr.bf16.mxu0 0
        %1158 = vmatpush2.bf16.msra.mxu0 0
        %1159 = vmatprep.subr.bf16.mxu0 0
        %1160 = vmatpush2.bf16.msra.mxu0 0
        %1161 = vmatprep.subr.bf16.mxu0 0
        %1162 = vmatpush2.bf16.msra.mxu0 0
        %1163 = vmatprep.subr.bf16.mxu0 0
        %1164 = vmatpush2.bf16.msra.mxu0 0
        %1165 = vmatprep.subr.bf16.mxu0 0
        %1166 = vmatpush2.bf16.msra.mxu0 0
        %1167 = vmatprep.mubr.bf16.mxu0 0
        %1168 = vmatmul.mubr.bf16.gmra.mxu0 %v674
        %v1169 = vpop.f32.mrf.mxu0
        %v1170 = vadd.f32 0.0, %v1169
        %v1171 = vpop.f32.mrf.mxu0
        %v1172 = vadd.f32 0.0, %v1171
        %v1173 = vpop.f32.mrf.mxu0
        %v1174 = vadd.f32 0.0, %v1173
        %v1175 = vpop.f32.mrf.mxu0
        %v1176 = vadd.f32 0.0, %v1175
        %1177 = vmatprep.mubr.bf16.mxu0 0
        %1178 = vmatmul.mubr.bf16.gmra.mxu0 %v677
        %v1179 = vpop.f32.mrf.mxu0
        %v1180 = vadd.f32 0.0, %v1179
        %v1181 = vpop.f32.mrf.mxu0
        %v1182 = vadd.f32 0.0, %v1181
        %v1183 = vpop.f32.mrf.mxu0
        %v1184 = vadd.f32 0.0, %v1183
        %v1185 = vpop.f32.mrf.mxu0
        %v1186 = vadd.f32 0.0, %v1185
        %1187 = vmatprep.mubr.bf16.mxu0 0
        %1188 = vmatmul.mubr.bf16.gmra.mxu0 %v680
        %v1189 = vpop.f32.mrf.mxu0
        %v1190 = vadd.f32 0.0, %v1189
        %v1191 = vpop.f32.mrf.mxu0
        %v1192 = vadd.f32 0.0, %v1191
        %v1193 = vpop.f32.mrf.mxu0
        %v1194 = vadd.f32 0.0, %v1193
        %v1195 = vpop.f32.mrf.mxu0
        %v1196 = vadd.f32 0.0, %v1195
        %1197 = vmatprep.mubr.bf16.mxu0 0
        %1198 = vmatmul.mubr.bf16.gmra.mxu0 %v683
        %v1199 = vpop.f32.mrf.mxu0
        %v1200 = vadd.f32 0.0, %v1199
        %v1201 = vpop.f32.mrf.mxu0
        %v1202 = vadd.f32 0.0, %v1201
        %v1203 = vpop.f32.mrf.mxu0
        %v1204 = vadd.f32 0.0, %v1203
        %v1205 = vpop.f32.mrf.mxu0
        %v1206 = vadd.f32 0.0, %v1205
        %1207 = vmatprep.mubr.bf16.mxu0 0
        %1208 = vmatmul.mubr.bf16.gmra.mxu0 %v686
        %v1209 = vpop.f32.mrf.mxu0
        %v1210 = vadd.f32 0.0, %v1209
        %v1211 = vpop.f32.mrf.mxu0
        %v1212 = vadd.f32 0.0, %v1211
        %v1213 = vpop.f32.mrf.mxu0
        %v1214 = vadd.f32 0.0, %v1213
        %v1215 = vpop.f32.mrf.mxu0
        %v1216 = vadd.f32 0.0, %v1215
        %1217 = vmatprep.mubr.bf16.mxu0 0
        %1218 = vmatmul.mubr.bf16.gmra.mxu0 %v689
        %v1219 = vpop.f32.mrf.mxu0
        %v1220 = vadd.f32 0.0, %v1219
        %v1221 = vpop.f32.mrf.mxu0
        %v1222 = vadd.f32 0.0, %v1221
        %v1223 = vpop.f32.mrf.mxu0
        %v1224 = vadd.f32 0.0, %v1223
        %v1225 = vpop.f32.mrf.mxu0
        %v1226 = vadd.f32 0.0, %v1225
        %1227 = vmatprep.mubr.bf16.mxu0 0
        %1228 = vmatmul.mubr.bf16.gmra.mxu0 %v692
        %v1229 = vpop.f32.mrf.mxu0
        %v1230 = vadd.f32 0.0, %v1229
        %v1231 = vpop.f32.mrf.mxu0
        %v1232 = vadd.f32 0.0, %v1231
        %v1233 = vpop.f32.mrf.mxu0
        %v1234 = vadd.f32 0.0, %v1233
        %v1235 = vpop.f32.mrf.mxu0
        %v1236 = vadd.f32 0.0, %v1235
        %1237 = vmatprep.mubr.bf16.mxu0 0
        %1238 = vmatmul.mubr.bf16.gmra.mxu0 %v695
        %v1239 = vpop.f32.mrf.mxu0
        %v1240 = vadd.f32 0.0, %v1239
        %v1241 = vpop.f32.mrf.mxu0
        %v1242 = vadd.f32 0.0, %v1241
        %v1243 = vpop.f32.mrf.mxu0
        %v1244 = vadd.f32 0.0, %v1243
        %v1245 = vpop.f32.mrf.mxu0
        %v1246 = vadd.f32 0.0, %v1245
        %1247 = vmatprep.mubr.bf16.mxu0 0
        %1248 = vmatmul.mubr.bf16.gmra.mxu0 %v698
        %v1249 = vpop.f32.mrf.mxu0
        %v1250 = vadd.f32 0.0, %v1249
        %v1251 = vpop.f32.mrf.mxu0
        %v1252 = vadd.f32 0.0, %v1251
        %v1253 = vpop.f32.mrf.mxu0
        %v1254 = vadd.f32 0.0, %v1253
        %v1255 = vpop.f32.mrf.mxu0
        %v1256 = vadd.f32 0.0, %v1255
        %1257 = vmatprep.mubr.bf16.mxu0 0
        %1258 = vmatmul.mubr.bf16.gmra.mxu0 %v701
        %v1259 = vpop.f32.mrf.mxu0
        %v1260 = vadd.f32 0.0, %v1259
        %v1261 = vpop.f32.mrf.mxu0
        %v1262 = vadd.f32 0.0, %v1261
        %v1263 = vpop.f32.mrf.mxu0
        %v1264 = vadd.f32 0.0, %v1263
        %v1265 = vpop.f32.mrf.mxu0
        %v1266 = vadd.f32 0.0, %v1265
        %1267 = vmatprep.mubr.bf16.mxu0 0
        %1268 = vmatmul.mubr.bf16.gmra.mxu0 %v704
        %v1269 = vpop.f32.mrf.mxu0
        %v1270 = vadd.f32 0.0, %v1269
        %v1271 = vpop.f32.mrf.mxu0
        %v1272 = vadd.f32 0.0, %v1271
        %v1273 = vpop.f32.mrf.mxu0
        %v1274 = vadd.f32 0.0, %v1273
        %v1275 = vpop.f32.mrf.mxu0
        %v1276 = vadd.f32 0.0, %v1275
        %1277 = vmatprep.mubr.bf16.mxu0 0
        %1278 = vmatmul.mubr.bf16.gmra.mxu0 %v707
        %v1279 = vpop.f32.mrf.mxu0
        %v1280 = vadd.f32 0.0, %v1279
        %v1281 = vpop.f32.mrf.mxu0
        %v1282 = vadd.f32 0.0, %v1281
        %v1283 = vpop.f32.mrf.mxu0
        %v1284 = vadd.f32 0.0, %v1283
        %v1285 = vpop.f32.mrf.mxu0
        %v1286 = vadd.f32 0.0, %v1285
        %1287 = vmatprep.mubr.bf16.mxu0 0
        %1288 = vmatmul.mubr.bf16.gmra.mxu0 %v710
        %v1289 = vpop.f32.mrf.mxu0
        %v1290 = vadd.f32 0.0, %v1289
        %v1291 = vpop.f32.mrf.mxu0
        %v1292 = vadd.f32 0.0, %v1291
        %v1293 = vpop.f32.mrf.mxu0
        %v1294 = vadd.f32 0.0, %v1293
        %v1295 = vpop.f32.mrf.mxu0
        %v1296 = vadd.f32 0.0, %v1295
        %1297 = vmatprep.mubr.bf16.mxu0 0
        %1298 = vmatmul.mubr.bf16.gmra.mxu0 %v713
        %v1299 = vpop.f32.mrf.mxu0
        %v1300 = vadd.f32 0.0, %v1299
        %v1301 = vpop.f32.mrf.mxu0
        %v1302 = vadd.f32 0.0, %v1301
        %v1303 = vpop.f32.mrf.mxu0
        %v1304 = vadd.f32 0.0, %v1303
        %v1305 = vpop.f32.mrf.mxu0
        %v1306 = vadd.f32 0.0, %v1305
        %1307 = vmatprep.mubr.bf16.mxu0 0
        %1308 = vmatmul.mubr.bf16.gmra.mxu0 %v716
        %v1309 = vpop.f32.mrf.mxu0
        %v1310 = vadd.f32 0.0, %v1309
        %v1311 = vpop.f32.mrf.mxu0
        %v1312 = vadd.f32 0.0, %v1311
        %v1313 = vpop.f32.mrf.mxu0
        %v1314 = vadd.f32 0.0, %v1313
        %v1315 = vpop.f32.mrf.mxu0
        %v1316 = vadd.f32 0.0, %v1315
        %1317 = vmatprep.mubr.bf16.mxu0 0
        %1318 = vmatmul.mubr.bf16.gmra.mxu0 %v719
        %v1319 = vpop.f32.mrf.mxu0
        %v1320 = vadd.f32 0.0, %v1319
        %v1321 = vpop.f32.mrf.mxu0
        %v1322 = vadd.f32 0.0, %v1321
        %v1323 = vpop.f32.mrf.mxu0
        %v1324 = vadd.f32 0.0, %v1323
        %v1325 = vpop.f32.mrf.mxu0
        %v1326 = vadd.f32 0.0, %v1325
        %1327 = vmatprep.mubr.bf16.mxu0 0
        %1328 = vmatmul.mubr.bf16.gmra.mxu0 %v722
        %v1329 = vpop.f32.mrf.mxu0
        %v1330 = vadd.f32 0.0, %v1329
        %v1331 = vpop.f32.mrf.mxu0
        %v1332 = vadd.f32 0.0, %v1331
        %v1333 = vpop.f32.mrf.mxu0
        %v1334 = vadd.f32 0.0, %v1333
        %v1335 = vpop.f32.mrf.mxu0
        %v1336 = vadd.f32 0.0, %v1335
        %1337 = vmatprep.mubr.bf16.mxu0 0
        %1338 = vmatmul.mubr.bf16.gmra.mxu0 %v725
        %v1339 = vpop.f32.mrf.mxu0
        %v1340 = vadd.f32 0.0, %v1339
        %v1341 = vpop.f32.mrf.mxu0
        %v1342 = vadd.f32 0.0, %v1341
        %v1343 = vpop.f32.mrf.mxu0
        %v1344 = vadd.f32 0.0, %v1343
        %v1345 = vpop.f32.mrf.mxu0
        %v1346 = vadd.f32 0.0, %v1345
        %1347 = vmatprep.mubr.bf16.mxu0 0
        %1348 = vmatmul.mubr.bf16.gmra.mxu0 %v728
        %v1349 = vpop.f32.mrf.mxu0
        %v1350 = vadd.f32 0.0, %v1349
        %v1351 = vpop.f32.mrf.mxu0
        %v1352 = vadd.f32 0.0, %v1351
        %v1353 = vpop.f32.mrf.mxu0
        %v1354 = vadd.f32 0.0, %v1353
        %v1355 = vpop.f32.mrf.mxu0
        %v1356 = vadd.f32 0.0, %v1355
        %1357 = vmatprep.mubr.bf16.mxu0 0
        %1358 = vmatmul.mubr.bf16.gmra.mxu0 %v731
        %v1359 = vpop.f32.mrf.mxu0
        %v1360 = vadd.f32 0.0, %v1359
        %v1361 = vpop.f32.mrf.mxu0
        %v1362 = vadd.f32 0.0, %v1361
        %v1363 = vpop.f32.mrf.mxu0
        %v1364 = vadd.f32 0.0, %v1363
        %v1365 = vpop.f32.mrf.mxu0
        %v1366 = vadd.f32 0.0, %v1365
        %1367 = vmatprep.mubr.bf16.mxu0 0
        %1368 = vmatmul.mubr.bf16.gmra.mxu0 %v734
        %v1369 = vpop.f32.mrf.mxu0
        %v1370 = vadd.f32 0.0, %v1369
        %v1371 = vpop.f32.mrf.mxu0
        %v1372 = vadd.f32 0.0, %v1371
        %v1373 = vpop.f32.mrf.mxu0
        %v1374 = vadd.f32 0.0, %v1373
        %v1375 = vpop.f32.mrf.mxu0
        %v1376 = vadd.f32 0.0, %v1375
        %1377 = vmatprep.mubr.bf16.mxu0 0
        %1378 = vmatmul.mubr.bf16.gmra.mxu0 %v737
        %v1379 = vpop.f32.mrf.mxu0
        %v1380 = vadd.f32 0.0, %v1379
        %v1381 = vpop.f32.mrf.mxu0
        %v1382 = vadd.f32 0.0, %v1381
        %v1383 = vpop.f32.mrf.mxu0
        %v1384 = vadd.f32 0.0, %v1383
        %v1385 = vpop.f32.mrf.mxu0
        %v1386 = vadd.f32 0.0, %v1385
        %1387 = vmatprep.mubr.bf16.mxu0 0
        %1388 = vmatmul.mubr.bf16.gmra.mxu0 %v740
        %v1389 = vpop.f32.mrf.mxu0
        %v1390 = vadd.f32 0.0, %v1389
        %v1391 = vpop.f32.mrf.mxu0
        %v1392 = vadd.f32 0.0, %v1391
        %v1393 = vpop.f32.mrf.mxu0
        %v1394 = vadd.f32 0.0, %v1393
        %v1395 = vpop.f32.mrf.mxu0
        %v1396 = vadd.f32 0.0, %v1395
        %1397 = vmatprep.mubr.bf16.mxu0 0
        %1398 = vmatmul.mubr.bf16.gmra.mxu0 %v743
        %v1399 = vpop.f32.mrf.mxu0
        %v1400 = vadd.f32 0.0, %v1399
        %v1401 = vpop.f32.mrf.mxu0
        %v1402 = vadd.f32 0.0, %v1401
        %v1403 = vpop.f32.mrf.mxu0
        %v1404 = vadd.f32 0.0, %v1403
        %v1405 = vpop.f32.mrf.mxu0
        %v1406 = vadd.f32 0.0, %v1405
        %1407 = vmatprep.mubr.bf16.mxu0 0
        %1408 = vmatmul.mubr.bf16.gmra.mxu0 %v746
        %v1409 = vpop.f32.mrf.mxu0
        %v1410 = vadd.f32 0.0, %v1409
        %v1411 = vpop.f32.mrf.mxu0
        %v1412 = vadd.f32 0.0, %v1411
        %v1413 = vpop.f32.mrf.mxu0
        %v1414 = vadd.f32 0.0, %v1413
        %v1415 = vpop.f32.mrf.mxu0
        %v1416 = vadd.f32 0.0, %v1415
        %1417 = vmatprep.mubr.bf16.mxu0 0
        %1418 = vmatmul.mubr.bf16.gmra.mxu0 %v749
        %v1419 = vpop.f32.mrf.mxu0
        %v1420 = vadd.f32 0.0, %v1419
        %v1421 = vpop.f32.mrf.mxu0
        %v1422 = vadd.f32 0.0, %v1421
        %v1423 = vpop.f32.mrf.mxu0
        %v1424 = vadd.f32 0.0, %v1423
        %v1425 = vpop.f32.mrf.mxu0
        %v1426 = vadd.f32 0.0, %v1425
        %1427 = vmatprep.mubr.bf16.mxu0 0
        %1428 = vmatmul.mubr.bf16.gmra.mxu0 %v752
        %v1429 = vpop.f32.mrf.mxu0
        %v1430 = vadd.f32 0.0, %v1429
        %v1431 = vpop.f32.mrf.mxu0
        %v1432 = vadd.f32 0.0, %v1431
        %v1433 = vpop.f32.mrf.mxu0
        %v1434 = vadd.f32 0.0, %v1433
        %v1435 = vpop.f32.mrf.mxu0
        %v1436 = vadd.f32 0.0, %v1435
        %1437 = vmatprep.mubr.bf16.mxu0 0
        %1438 = vmatmul.mubr.bf16.gmra.mxu0 %v755
        %v1439 = vpop.f32.mrf.mxu0
        %v1440 = vadd.f32 0.0, %v1439
        %v1441 = vpop.f32.mrf.mxu0
        %v1442 = vadd.f32 0.0, %v1441
        %v1443 = vpop.f32.mrf.mxu0
        %v1444 = vadd.f32 0.0, %v1443
        %v1445 = vpop.f32.mrf.mxu0
        %v1446 = vadd.f32 0.0, %v1445
        %1447 = vmatprep.mubr.bf16.mxu0 0
        %1448 = vmatmul.mubr.bf16.gmra.mxu0 %v758
        %v1449 = vpop.f32.mrf.mxu0
        %v1450 = vadd.f32 0.0, %v1449
        %v1451 = vpop.f32.mrf.mxu0
        %v1452 = vadd.f32 0.0, %v1451
        %v1453 = vpop.f32.mrf.mxu0
        %v1454 = vadd.f32 0.0, %v1453
        %v1455 = vpop.f32.mrf.mxu0
        %v1456 = vadd.f32 0.0, %v1455
        %1457 = vmatprep.mubr.bf16.mxu0 0
        %1458 = vmatmul.mubr.bf16.gmra.mxu0 %v761
        %v1459 = vpop.f32.mrf.mxu0
        %v1460 = vadd.f32 0.0, %v1459
        %v1461 = vpop.f32.mrf.mxu0
        %v1462 = vadd.f32 0.0, %v1461
        %v1463 = vpop.f32.mrf.mxu0
        %v1464 = vadd.f32 0.0, %v1463
        %v1465 = vpop.f32.mrf.mxu0
        %v1466 = vadd.f32 0.0, %v1465
        %1467 = vmatprep.mubr.bf16.mxu0 0
        %1468 = vmatmul.mubr.bf16.gmra.mxu0 %v764
        %v1469 = vpop.f32.mrf.mxu0
        %v1470 = vadd.f32 0.0, %v1469
        %v1471 = vpop.f32.mrf.mxu0
        %v1472 = vadd.f32 0.0, %v1471
        %v1473 = vpop.f32.mrf.mxu0
        %v1474 = vadd.f32 0.0, %v1473
        %v1475 = vpop.f32.mrf.mxu0
        %v1476 = vadd.f32 0.0, %v1475
        %1477 = vmatprep.mubr.bf16.mxu0 0
        %1478 = vmatmul.mubr.bf16.gmra.mxu0 %v767
        %v1479 = vpop.f32.mrf.mxu0
        %v1480 = vadd.f32 0.0, %v1479
        %v1481 = vpop.f32.mrf.mxu0
        %v1482 = vadd.f32 0.0, %v1481
        %v1483 = vpop.f32.mrf.mxu0
        %v1484 = vadd.f32 0.0, %v1483
        %v1485 = vpop.f32.mrf.mxu0
        %v1486 = vadd.f32 0.0, %v1485
        %1487 = vdwg.mxu0
        %v1488 = vmax.f32 %v817, %v821
        %v1489 = vmax.f32 %v1488, %v827
        %v1490 = vmax.f32 %v1489, %v831
        %v1491 = vmax.f32 %v1490, %v837
        %v1492 = vmax.f32 %v1491, %v841
        %v1493 = vmax.f32 %v1492, %v847
        %v1494 = vmax.f32 %v1493, %v851
        %v1495 = vmax.f32 %v1494, %v857
        %v1496 = vmax.f32 %v1495, %v861
        %v1497 = vmax.f32 %v1496, %v867
        %v1498 = vmax.f32 %v1497, %v871
        %v1499 = vmax.f32 %v1498, %v877
        %v1500 = vmax.f32 %v1499, %v881
        %v1501 = vmax.f32 %v1500, %v887
        %v1502 = vmax.f32 %v1501, %v891
        %v1503 = vmax.f32 %v1502, %v897
        %v1504 = vmax.f32 %v1503, %v901
        %v1505 = vmax.f32 %v1504, %v907
        %v1506 = vmax.f32 %v1505, %v911
        %v1507 = vmax.f32 %v1506, %v917
        %v1508 = vmax.f32 %v1507, %v921
        %v1509 = vmax.f32 %v1508, %v927
        %v1510 = vmax.f32 %v1509, %v931
        %v1511 = vmax.f32 %v1510, %v937
        %v1512 = vmax.f32 %v1511, %v941
        %v1513 = vmax.f32 %v1512, %v947
        %v1514 = vmax.f32 %v1513, %v951
        %v1515 = vmax.f32 %v1514, %v957
        %v1516 = vmax.f32 %v1515, %v961
        %v1517 = vmax.f32 %v1516, %v967
        %v1518 = vmax.f32 %v1517, %v971
        %v1519 = vmax.f32 %v1518, %v977
        %v1520 = vmax.f32 %v1519, %v981
        %v1521 = vmax.f32 %v1520, %v987
        %v1522 = vmax.f32 %v1521, %v991
        %v1523 = vmax.f32 %v1522, %v997
        %v1524 = vmax.f32 %v1523, %v1001
        %v1525 = vmax.f32 %v1524, %v1007
        %v1526 = vmax.f32 %v1525, %v1011
        %v1527 = vmax.f32 %v1526, %v1017
        %v1528 = vmax.f32 %v1527, %v1021
        %v1529 = vmax.f32 %v1528, %v1027
        %v1530 = vmax.f32 %v1529, %v1031
        %v1531 = vmax.f32 %v1530, %v1037
        %v1532 = vmax.f32 %v1531, %v1041
        %v1533 = vmax.f32 %v1532, %v1047
        %v1534 = vmax.f32 %v1533, %v1051
        %v1535 = vmax.f32 %v1534, %v1057
        %v1536 = vmax.f32 %v1535, %v1061
        %v1537 = vmax.f32 %v1536, %v1067
        %v1538 = vmax.f32 %v1537, %v1071
        %v1539 = vmax.f32 %v1538, %v1077
        %v1540 = vmax.f32 %v1539, %v1081
        %v1541 = vmax.f32 %v1540, %v1087
        %v1542 = vmax.f32 %v1541, %v1091
        %v1543 = vmax.f32 %v1542, %v1097
        %v1544 = vmax.f32 %v1543, %v1101
        %v1545 = vmax.f32 %v1544, %v1107
        %v1546 = vmax.f32 %v1545, %v1111
        %v1547 = vmax.f32 %v1546, %v1117
        %v1548 = vmax.f32 %v1547, %v1121
        %v1549 = vmax.f32 %v1548, %v1127
        %v1550 = vmax.f32 %v1549, %v1131
        %v1551 = vrot.slane %v1550, 4
        %v1552 = vmax.f32 %v1550, %v1551
        %v1553 = vrot.slane %v1552, 2
        %v1554 = vmax.f32 %v1552, %v1553
        %v1555 = vrot.slane %v1554, 1
        %v1556 = vmax.f32 %v1554, %v1555
        %v1557 = vmax.f32 %v819, %v823
        %v1558 = vmax.f32 %v1557, %v829
        %v1559 = vmax.f32 %v1558, %v833
        %v1560 = vmax.f32 %v1559, %v839
        %v1561 = vmax.f32 %v1560, %v843
        %v1562 = vmax.f32 %v1561, %v849
        %v1563 = vmax.f32 %v1562, %v853
        %v1564 = vmax.f32 %v1563, %v859
        %v1565 = vmax.f32 %v1564, %v863
        %v1566 = vmax.f32 %v1565, %v869
        %v1567 = vmax.f32 %v1566, %v873
        %v1568 = vmax.f32 %v1567, %v879
        %v1569 = vmax.f32 %v1568, %v883
        %v1570 = vmax.f32 %v1569, %v889
        %v1571 = vmax.f32 %v1570, %v893
        %v1572 = vmax.f32 %v1571, %v899
        %v1573 = vmax.f32 %v1572, %v903
        %v1574 = vmax.f32 %v1573, %v909
        %v1575 = vmax.f32 %v1574, %v913
        %v1576 = vmax.f32 %v1575, %v919
        %v1577 = vmax.f32 %v1576, %v923
        %v1578 = vmax.f32 %v1577, %v929
        %v1579 = vmax.f32 %v1578, %v933
        %v1580 = vmax.f32 %v1579, %v939
        %v1581 = vmax.f32 %v1580, %v943
        %v1582 = vmax.f32 %v1581, %v949
        %v1583 = vmax.f32 %v1582, %v953
        %v1584 = vmax.f32 %v1583, %v959
        %v1585 = vmax.f32 %v1584, %v963
        %v1586 = vmax.f32 %v1585, %v969
        %v1587 = vmax.f32 %v1586, %v973
        %v1588 = vmax.f32 %v1587, %v979
        %v1589 = vmax.f32 %v1588, %v983
        %v1590 = vmax.f32 %v1589, %v989
        %v1591 = vmax.f32 %v1590, %v993
        %v1592 = vmax.f32 %v1591, %v999
        %v1593 = vmax.f32 %v1592, %v1003
        %v1594 = vmax.f32 %v1593, %v1009
        %v1595 = vmax.f32 %v1594, %v1013
        %v1596 = vmax.f32 %v1595, %v1019
        %v1597 = vmax.f32 %v1596, %v1023
        %v1598 = vmax.f32 %v1597, %v1029
        %v1599 = vmax.f32 %v1598, %v1033
        %v1600 = vmax.f32 %v1599, %v1039
        %v1601 = vmax.f32 %v1600, %v1043
        %v1602 = vmax.f32 %v1601, %v1049
        %v1603 = vmax.f32 %v1602, %v1053
        %v1604 = vmax.f32 %v1603, %v1059
        %v1605 = vmax.f32 %v1604, %v1063
        %v1606 = vmax.f32 %v1605, %v1069
        %v1607 = vmax.f32 %v1606, %v1073
        %v1608 = vmax.f32 %v1607, %v1079
        %v1609 = vmax.f32 %v1608, %v1083
        %v1610 = vmax.f32 %v1609, %v1089
        %v1611 = vmax.f32 %v1610, %v1093
        %v1612 = vmax.f32 %v1611, %v1099
        %v1613 = vmax.f32 %v1612, %v1103
        %v1614 = vmax.f32 %v1613, %v1109
        %v1615 = vmax.f32 %v1614, %v1113
        %v1616 = vmax.f32 %v1615, %v1119
        %v1617 = vmax.f32 %v1616, %v1123
        %v1618 = vmax.f32 %v1617, %v1129
        %v1619 = vmax.f32 %v1618, %v1133
        %v1620 = vrot.slane %v1619, 4
        %v1621 = vmax.f32 %v1619, %v1620
        %v1622 = vrot.slane %v1621, 2
        %v1623 = vmax.f32 %v1621, %v1622
        %v1624 = vrot.slane %v1623, 1
        %v1625 = vmax.f32 %v1623, %v1624
        %v1626 = vmax.f32 %v1170, %v1174
        %v1627 = vmax.f32 %v1626, %v1180
        %v1628 = vmax.f32 %v1627, %v1184
        %v1629 = vmax.f32 %v1628, %v1190
        %v1630 = vmax.f32 %v1629, %v1194
        %v1631 = vmax.f32 %v1630, %v1200
        %v1632 = vmax.f32 %v1631, %v1204
        %v1633 = vmax.f32 %v1632, %v1210
        %v1634 = vmax.f32 %v1633, %v1214
        %v1635 = vmax.f32 %v1634, %v1220
        %v1636 = vmax.f32 %v1635, %v1224
        %v1637 = vmax.f32 %v1636, %v1230
        %v1638 = vmax.f32 %v1637, %v1234
        %v1639 = vmax.f32 %v1638, %v1240
        %v1640 = vmax.f32 %v1639, %v1244
        %v1641 = vmax.f32 %v1640, %v1250
        %v1642 = vmax.f32 %v1641, %v1254
        %v1643 = vmax.f32 %v1642, %v1260
        %v1644 = vmax.f32 %v1643, %v1264
        %v1645 = vmax.f32 %v1644, %v1270
        %v1646 = vmax.f32 %v1645, %v1274
        %v1647 = vmax.f32 %v1646, %v1280
        %v1648 = vmax.f32 %v1647, %v1284
        %v1649 = vmax.f32 %v1648, %v1290
        %v1650 = vmax.f32 %v1649, %v1294
        %v1651 = vmax.f32 %v1650, %v1300
        %v1652 = vmax.f32 %v1651, %v1304
        %v1653 = vmax.f32 %v1652, %v1310
        %v1654 = vmax.f32 %v1653, %v1314
        %v1655 = vmax.f32 %v1654, %v1320
        %v1656 = vmax.f32 %v1655, %v1324
        %v1657 = vmax.f32 %v1656, %v1330
        %v1658 = vmax.f32 %v1657, %v1334
        %v1659 = vmax.f32 %v1658, %v1340
        %v1660 = vmax.f32 %v1659, %v1344
        %v1661 = vmax.f32 %v1660, %v1350
        %v1662 = vmax.f32 %v1661, %v1354
        %v1663 = vmax.f32 %v1662, %v1360
        %v1664 = vmax.f32 %v1663, %v1364
        %v1665 = vmax.f32 %v1664, %v1370
        %v1666 = vmax.f32 %v1665, %v1374
        %v1667 = vmax.f32 %v1666, %v1380
        %v1668 = vmax.f32 %v1667, %v1384
        %v1669 = vmax.f32 %v1668, %v1390
        %v1670 = vmax.f32 %v1669, %v1394
        %v1671 = vmax.f32 %v1670, %v1400
        %v1672 = vmax.f32 %v1671, %v1404
        %v1673 = vmax.f32 %v1672, %v1410
        %v1674 = vmax.f32 %v1673, %v1414
        %v1675 = vmax.f32 %v1674, %v1420
        %v1676 = vmax.f32 %v1675, %v1424
        %v1677 = vmax.f32 %v1676, %v1430
        %v1678 = vmax.f32 %v1677, %v1434
        %v1679 = vmax.f32 %v1678, %v1440
        %v1680 = vmax.f32 %v1679, %v1444
        %v1681 = vmax.f32 %v1680, %v1450
        %v1682 = vmax.f32 %v1681, %v1454
        %v1683 = vmax.f32 %v1682, %v1460
        %v1684 = vmax.f32 %v1683, %v1464
        %v1685 = vmax.f32 %v1684, %v1470
        %v1686 = vmax.f32 %v1685, %v1474
        %v1687 = vmax.f32 %v1686, %v1480
        %v1688 = vmax.f32 %v1687, %v1484
        %v1689 = vrot.slane %v1688, 4
        %v1690 = vmax.f32 %v1688, %v1689
        %v1691 = vrot.slane %v1690, 2
        %v1692 = vmax.f32 %v1690, %v1691
        %v1693 = vrot.slane %v1692, 1
        %v1694 = vmax.f32 %v1692, %v1693
        %v1695 = vmax.f32 %v1172, %v1176
        %v1696 = vmax.f32 %v1695, %v1182
        %v1697 = vmax.f32 %v1696, %v1186
        %v1698 = vmax.f32 %v1697, %v1192
        %v1699 = vmax.f32 %v1698, %v1196
        %v1700 = vmax.f32 %v1699, %v1202
        %v1701 = vmax.f32 %v1700, %v1206
        %v1702 = vmax.f32 %v1701, %v1212
        %v1703 = vmax.f32 %v1702, %v1216
        %v1704 = vmax.f32 %v1703, %v1222
        %v1705 = vmax.f32 %v1704, %v1226
        %v1706 = vmax.f32 %v1705, %v1232
        %v1707 = vmax.f32 %v1706, %v1236
        %v1708 = vmax.f32 %v1707, %v1242
        %v1709 = vmax.f32 %v1708, %v1246
        %v1710 = vmax.f32 %v1709, %v1252
        %v1711 = vmax.f32 %v1710, %v1256
        %v1712 = vmax.f32 %v1711, %v1262
        %v1713 = vmax.f32 %v1712, %v1266
        %v1714 = vmax.f32 %v1713, %v1272
        %v1715 = vmax.f32 %v1714, %v1276
        %v1716 = vmax.f32 %v1715, %v1282
        %v1717 = vmax.f32 %v1716, %v1286
        %v1718 = vmax.f32 %v1717, %v1292
        %v1719 = vmax.f32 %v1718, %v1296
        %v1720 = vmax.f32 %v1719, %v1302
        %v1721 = vmax.f32 %v1720, %v1306
        %v1722 = vmax.f32 %v1721, %v1312
        %v1723 = vmax.f32 %v1722, %v1316
        %v1724 = vmax.f32 %v1723, %v1322
        %v1725 = vmax.f32 %v1724, %v1326
        %v1726 = vmax.f32 %v1725, %v1332
        %v1727 = vmax.f32 %v1726, %v1336
        %v1728 = vmax.f32 %v1727, %v1342
        %v1729 = vmax.f32 %v1728, %v1346
        %v1730 = vmax.f32 %v1729, %v1352
        %v1731 = vmax.f32 %v1730, %v1356
        %v1732 = vmax.f32 %v1731, %v1362
        %v1733 = vmax.f32 %v1732, %v1366
        %v1734 = vmax.f32 %v1733, %v1372
        %v1735 = vmax.f32 %v1734, %v1376
        %v1736 = vmax.f32 %v1735, %v1382
        %v1737 = vmax.f32 %v1736, %v1386
        %v1738 = vmax.f32 %v1737, %v1392
        %v1739 = vmax.f32 %v1738, %v1396
        %v1740 = vmax.f32 %v1739, %v1402
        %v1741 = vmax.f32 %v1740, %v1406
        %v1742 = vmax.f32 %v1741, %v1412
        %v1743 = vmax.f32 %v1742, %v1416
        %v1744 = vmax.f32 %v1743, %v1422
        %v1745 = vmax.f32 %v1744, %v1426
        %v1746 = vmax.f32 %v1745, %v1432
        %v1747 = vmax.f32 %v1746, %v1436
        %v1748 = vmax.f32 %v1747, %v1442
        %v1749 = vmax.f32 %v1748, %v1446
        %v1750 = vmax.f32 %v1749, %v1452
        %v1751 = vmax.f32 %v1750, %v1456
        %v1752 = vmax.f32 %v1751, %v1462
        %v1753 = vmax.f32 %v1752, %v1466
        %v1754 = vmax.f32 %v1753, %v1472
        %v1755 = vmax.f32 %v1754, %v1476
        %v1756 = vmax.f32 %v1755, %v1482
        %v1757 = vmax.f32 %v1756, %v1486
        %v1758 = vrot.slane %v1757, 4
        %v1759 = vmax.f32 %v1757, %v1758
        %v1760 = vrot.slane %v1759, 2
        %v1761 = vmax.f32 %v1759, %v1760
        %v1762 = vrot.slane %v1761, 1
        %v1763 = vmax.f32 %v1761, %v1762
        %v1764 = vsub.f32 %v817, %v1556
        %v1765 = vsub.f32 %v819, %v1625
        %v1766 = vsub.f32 %v1170, %v1694
        %v1767 = vsub.f32 %v1172, %v1763
        %v1768 = vsub.f32 %v821, %v1556
        %v1769 = vsub.f32 %v823, %v1625
        %v1770 = vsub.f32 %v1174, %v1694
        %v1771 = vsub.f32 %v1176, %v1763
        %v1772 = vsub.f32 %v827, %v1556
        %v1773 = vsub.f32 %v829, %v1625
        %v1774 = vsub.f32 %v1180, %v1694
        %v1775 = vsub.f32 %v1182, %v1763
        %v1776 = vsub.f32 %v831, %v1556
        %v1777 = vsub.f32 %v833, %v1625
        %v1778 = vsub.f32 %v1184, %v1694
        %v1779 = vsub.f32 %v1186, %v1763
        %v1780 = vsub.f32 %v837, %v1556
        %v1781 = vsub.f32 %v839, %v1625
        %v1782 = vsub.f32 %v1190, %v1694
        %v1783 = vsub.f32 %v1192, %v1763
        %v1784 = vsub.f32 %v841, %v1556
        %v1785 = vsub.f32 %v843, %v1625
        %v1786 = vsub.f32 %v1194, %v1694
        %v1787 = vsub.f32 %v1196, %v1763
        %v1788 = vsub.f32 %v847, %v1556
        %v1789 = vsub.f32 %v849, %v1625
        %v1790 = vsub.f32 %v1200, %v1694
        %v1791 = vsub.f32 %v1202, %v1763
        %v1792 = vsub.f32 %v851, %v1556
        %v1793 = vsub.f32 %v853, %v1625
        %v1794 = vsub.f32 %v1204, %v1694
        %v1795 = vsub.f32 %v1206, %v1763
        %v1796 = vsub.f32 %v857, %v1556
        %v1797 = vsub.f32 %v859, %v1625
        %v1798 = vsub.f32 %v1210, %v1694
        %v1799 = vsub.f32 %v1212, %v1763
        %v1800 = vsub.f32 %v861, %v1556
        %v1801 = vsub.f32 %v863, %v1625
        %v1802 = vsub.f32 %v1214, %v1694
        %v1803 = vsub.f32 %v1216, %v1763
        %v1804 = vsub.f32 %v867, %v1556
        %v1805 = vsub.f32 %v869, %v1625
        %v1806 = vsub.f32 %v1220, %v1694
        %v1807 = vsub.f32 %v1222, %v1763
        %v1808 = vsub.f32 %v871, %v1556
        %v1809 = vsub.f32 %v873, %v1625
        %v1810 = vsub.f32 %v1224, %v1694
        %v1811 = vsub.f32 %v1226, %v1763
        %v1812 = vsub.f32 %v877, %v1556
        %v1813 = vsub.f32 %v879, %v1625
        %v1814 = vsub.f32 %v1230, %v1694
        %v1815 = vsub.f32 %v1232, %v1763
        %v1816 = vsub.f32 %v881, %v1556
        %v1817 = vsub.f32 %v883, %v1625
        %v1818 = vsub.f32 %v1234, %v1694
        %v1819 = vsub.f32 %v1236, %v1763
        %v1820 = vsub.f32 %v887, %v1556
        %v1821 = vsub.f32 %v889, %v1625
        %v1822 = vsub.f32 %v1240, %v1694
        %v1823 = vsub.f32 %v1242, %v1763
        %v1824 = vsub.f32 %v891, %v1556
        %v1825 = vsub.f32 %v893, %v1625
        %v1826 = vsub.f32 %v1244, %v1694
        %v1827 = vsub.f32 %v1246, %v1763
        %v1828 = vsub.f32 %v897, %v1556
        %v1829 = vsub.f32 %v899, %v1625
        %v1830 = vsub.f32 %v1250, %v1694
        %v1831 = vsub.f32 %v1252, %v1763
        %v1832 = vsub.f32 %v901, %v1556
        %v1833 = vsub.f32 %v903, %v1625
        %v1834 = vsub.f32 %v1254, %v1694
        %v1835 = vsub.f32 %v1256, %v1763
        %v1836 = vsub.f32 %v907, %v1556
        %v1837 = vsub.f32 %v909, %v1625
        %v1838 = vsub.f32 %v1260, %v1694
        %v1839 = vsub.f32 %v1262, %v1763
        %v1840 = vsub.f32 %v911, %v1556
        %v1841 = vsub.f32 %v913, %v1625
        %v1842 = vsub.f32 %v1264, %v1694
        %v1843 = vsub.f32 %v1266, %v1763
        %v1844 = vsub.f32 %v917, %v1556
        %v1845 = vsub.f32 %v919, %v1625
        %v1846 = vsub.f32 %v1270, %v1694
        %v1847 = vsub.f32 %v1272, %v1763
        %v1848 = vsub.f32 %v921, %v1556
        %v1849 = vsub.f32 %v923, %v1625
        %v1850 = vsub.f32 %v1274, %v1694
        %v1851 = vsub.f32 %v1276, %v1763
        %v1852 = vsub.f32 %v927, %v1556
        %v1853 = vsub.f32 %v929, %v1625
        %v1854 = vsub.f32 %v1280, %v1694
        %v1855 = vsub.f32 %v1282, %v1763
        %v1856 = vsub.f32 %v931, %v1556
        %v1857 = vsub.f32 %v933, %v1625
        %v1858 = vsub.f32 %v1284, %v1694
        %v1859 = vsub.f32 %v1286, %v1763
        %v1860 = vsub.f32 %v937, %v1556
        %v1861 = vsub.f32 %v939, %v1625
        %v1862 = vsub.f32 %v1290, %v1694
        %v1863 = vsub.f32 %v1292, %v1763
        %v1864 = vsub.f32 %v941, %v1556
        %v1865 = vsub.f32 %v943, %v1625
        %v1866 = vsub.f32 %v1294, %v1694
        %v1867 = vsub.f32 %v1296, %v1763
        %v1868 = vsub.f32 %v947, %v1556
        %v1869 = vsub.f32 %v949, %v1625
        %v1870 = vsub.f32 %v1300, %v1694
        %v1871 = vsub.f32 %v1302, %v1763
        %v1872 = vsub.f32 %v951, %v1556
        %v1873 = vsub.f32 %v953, %v1625
        %v1874 = vsub.f32 %v1304, %v1694
        %v1875 = vsub.f32 %v1306, %v1763
        %v1876 = vsub.f32 %v957, %v1556
        %v1877 = vsub.f32 %v959, %v1625
        %v1878 = vsub.f32 %v1310, %v1694
        %v1879 = vsub.f32 %v1312, %v1763
        %v1880 = vsub.f32 %v961, %v1556
        %v1881 = vsub.f32 %v963, %v1625
        %v1882 = vsub.f32 %v1314, %v1694
        %v1883 = vsub.f32 %v1316, %v1763
        %v1884 = vsub.f32 %v967, %v1556
        %v1885 = vsub.f32 %v969, %v1625
        %v1886 = vsub.f32 %v1320, %v1694
        %v1887 = vsub.f32 %v1322, %v1763
        %v1888 = vsub.f32 %v971, %v1556
        %v1889 = vsub.f32 %v973, %v1625
        %v1890 = vsub.f32 %v1324, %v1694
        %v1891 = vsub.f32 %v1326, %v1763
        %v1892 = vsub.f32 %v977, %v1556
        %v1893 = vsub.f32 %v979, %v1625
        %v1894 = vsub.f32 %v1330, %v1694
        %v1895 = vsub.f32 %v1332, %v1763
        %v1896 = vsub.f32 %v981, %v1556
        %v1897 = vsub.f32 %v983, %v1625
        %v1898 = vsub.f32 %v1334, %v1694
        %v1899 = vsub.f32 %v1336, %v1763
        %v1900 = vsub.f32 %v987, %v1556
        %v1901 = vsub.f32 %v989, %v1625
        %v1902 = vsub.f32 %v1340, %v1694
        %v1903 = vsub.f32 %v1342, %v1763
        %v1904 = vsub.f32 %v991, %v1556
        %v1905 = vsub.f32 %v993, %v1625
        %v1906 = vsub.f32 %v1344, %v1694
        %v1907 = vsub.f32 %v1346, %v1763
        %v1908 = vsub.f32 %v997, %v1556
        %v1909 = vsub.f32 %v999, %v1625
        %v1910 = vsub.f32 %v1350, %v1694
        %v1911 = vsub.f32 %v1352, %v1763
        %v1912 = vsub.f32 %v1001, %v1556
        %v1913 = vsub.f32 %v1003, %v1625
        %v1914 = vsub.f32 %v1354, %v1694
        %v1915 = vsub.f32 %v1356, %v1763
        %v1916 = vsub.f32 %v1007, %v1556
        %v1917 = vsub.f32 %v1009, %v1625
        %v1918 = vsub.f32 %v1360, %v1694
        %v1919 = vsub.f32 %v1362, %v1763
        %v1920 = vsub.f32 %v1011, %v1556
        %v1921 = vsub.f32 %v1013, %v1625
        %v1922 = vsub.f32 %v1364, %v1694
        %v1923 = vsub.f32 %v1366, %v1763
        %v1924 = vsub.f32 %v1017, %v1556
        %v1925 = vsub.f32 %v1019, %v1625
        %v1926 = vsub.f32 %v1370, %v1694
        %v1927 = vsub.f32 %v1372, %v1763
        %v1928 = vsub.f32 %v1021, %v1556
        %v1929 = vsub.f32 %v1023, %v1625
        %v1930 = vsub.f32 %v1374, %v1694
        %v1931 = vsub.f32 %v1376, %v1763
        %v1932 = vsub.f32 %v1027, %v1556
        %v1933 = vsub.f32 %v1029, %v1625
        %v1934 = vsub.f32 %v1380, %v1694
        %v1935 = vsub.f32 %v1382, %v1763
        %v1936 = vsub.f32 %v1031, %v1556
        %v1937 = vsub.f32 %v1033, %v1625
        %v1938 = vsub.f32 %v1384, %v1694
        %v1939 = vsub.f32 %v1386, %v1763
        %v1940 = vsub.f32 %v1037, %v1556
        %v1941 = vsub.f32 %v1039, %v1625
        %v1942 = vsub.f32 %v1390, %v1694
        %v1943 = vsub.f32 %v1392, %v1763
        %v1944 = vsub.f32 %v1041, %v1556
        %v1945 = vsub.f32 %v1043, %v1625
        %v1946 = vsub.f32 %v1394, %v1694
        %v1947 = vsub.f32 %v1396, %v1763
        %v1948 = vsub.f32 %v1047, %v1556
        %v1949 = vsub.f32 %v1049, %v1625
        %v1950 = vsub.f32 %v1400, %v1694
        %v1951 = vsub.f32 %v1402, %v1763
        %v1952 = vsub.f32 %v1051, %v1556
        %v1953 = vsub.f32 %v1053, %v1625
        %v1954 = vsub.f32 %v1404, %v1694
        %v1955 = vsub.f32 %v1406, %v1763
        %v1956 = vsub.f32 %v1057, %v1556
        %v1957 = vsub.f32 %v1059, %v1625
        %v1958 = vsub.f32 %v1410, %v1694
        %v1959 = vsub.f32 %v1412, %v1763
        %v1960 = vsub.f32 %v1061, %v1556
        %v1961 = vsub.f32 %v1063, %v1625
        %v1962 = vsub.f32 %v1414, %v1694
        %v1963 = vsub.f32 %v1416, %v1763
        %v1964 = vsub.f32 %v1067, %v1556
        %v1965 = vsub.f32 %v1069, %v1625
        %v1966 = vsub.f32 %v1420, %v1694
        %v1967 = vsub.f32 %v1422, %v1763
        %v1968 = vsub.f32 %v1071, %v1556
        %v1969 = vsub.f32 %v1073, %v1625
        %v1970 = vsub.f32 %v1424, %v1694
        %v1971 = vsub.f32 %v1426, %v1763
        %v1972 = vsub.f32 %v1077, %v1556
        %v1973 = vsub.f32 %v1079, %v1625
        %v1974 = vsub.f32 %v1430, %v1694
        %v1975 = vsub.f32 %v1432, %v1763
        %v1976 = vsub.f32 %v1081, %v1556
        %v1977 = vsub.f32 %v1083, %v1625
        %v1978 = vsub.f32 %v1434, %v1694
        %v1979 = vsub.f32 %v1436, %v1763
        %v1980 = vsub.f32 %v1087, %v1556
        %v1981 = vsub.f32 %v1089, %v1625
        %v1982 = vsub.f32 %v1440, %v1694
        %v1983 = vsub.f32 %v1442, %v1763
        %v1984 = vsub.f32 %v1091, %v1556
        %v1985 = vsub.f32 %v1093, %v1625
        %v1986 = vsub.f32 %v1444, %v1694
        %v1987 = vsub.f32 %v1446, %v1763
        %v1988 = vsub.f32 %v1097, %v1556
        %v1989 = vsub.f32 %v1099, %v1625
        %v1990 = vsub.f32 %v1450, %v1694
        %v1991 = vsub.f32 %v1452, %v1763
        %v1992 = vsub.f32 %v1101, %v1556
        %v1993 = vsub.f32 %v1103, %v1625
        %v1994 = vsub.f32 %v1454, %v1694
        %v1995 = vsub.f32 %v1456, %v1763
        %v1996 = vsub.f32 %v1107, %v1556
        %v1997 = vsub.f32 %v1109, %v1625
        %v1998 = vsub.f32 %v1460, %v1694
        %v1999 = vsub.f32 %v1462, %v1763
        %v2000 = vsub.f32 %v1111, %v1556
        %v2001 = vsub.f32 %v1113, %v1625
        %v2002 = vsub.f32 %v1464, %v1694
        %v2003 = vsub.f32 %v1466, %v1763
        %v2004 = vsub.f32 %v1117, %v1556
        %v2005 = vsub.f32 %v1119, %v1625
        %v2006 = vsub.f32 %v1470, %v1694
        %v2007 = vsub.f32 %v1472, %v1763
        %v2008 = vsub.f32 %v1121, %v1556
        %v2009 = vsub.f32 %v1123, %v1625
        %v2010 = vsub.f32 %v1474, %v1694
        %v2011 = vsub.f32 %v1476, %v1763
        %v2012 = vsub.f32 %v1127, %v1556
        %v2013 = vsub.f32 %v1129, %v1625
        %v2014 = vsub.f32 %v1480, %v1694
        %v2015 = vsub.f32 %v1482, %v1763
        %v2016 = vsub.f32 %v1131, %v1556
        %v2017 = vsub.f32 %v1133, %v1625
        %v2018 = vsub.f32 %v1484, %v1694
        %v2019 = vsub.f32 %v1486, %v1763
        %v2020 = vmul.f32 %v1764, 1.442695
        %v2021 = vpow.pop %v2020
        %v2022 = vmul.f32 %v1765, 1.442695
        %v2023 = vpow.pop %v2022
        %v2024 = vmul.f32 %v1766, 1.442695
        %v2025 = vpow.pop %v2024
        %v2026 = vmul.f32 %v1767, 1.442695
        %v2027 = vpow.pop %v2026
        %v2028 = vmul.f32 %v1768, 1.442695
        %v2029 = vpow.pop %v2028
        %v2030 = vmul.f32 %v1769, 1.442695
        %v2031 = vpow.pop %v2030
        %v2032 = vmul.f32 %v1770, 1.442695
        %v2033 = vpow.pop %v2032
        %v2034 = vmul.f32 %v1771, 1.442695
        %v2035 = vpow.pop %v2034
        %v2036 = vmul.f32 %v1772, 1.442695
        %v2037 = vpow.pop %v2036
        %v2038 = vmul.f32 %v1773, 1.442695
        %v2039 = vpow.pop %v2038
        %v2040 = vmul.f32 %v1774, 1.442695
        %v2041 = vpow.pop %v2040
        %v2042 = vmul.f32 %v1775, 1.442695
        %v2043 = vpow.pop %v2042
        %v2044 = vmul.f32 %v1776, 1.442695
        %v2045 = vpow.pop %v2044
        %v2046 = vmul.f32 %v1777, 1.442695
        %v2047 = vpow.pop %v2046
        %v2048 = vmul.f32 %v1778, 1.442695
        %v2049 = vpow.pop %v2048
        %v2050 = vmul.f32 %v1779, 1.442695
        %v2051 = vpow.pop %v2050
        %v2052 = vmul.f32 %v1780, 1.442695
        %v2053 = vpow.pop %v2052
        %v2054 = vmul.f32 %v1781, 1.442695
        %v2055 = vpow.pop %v2054
        %v2056 = vmul.f32 %v1782, 1.442695
        %v2057 = vpow.pop %v2056
        %v2058 = vmul.f32 %v1783, 1.442695
        %v2059 = vpow.pop %v2058
        %v2060 = vmul.f32 %v1784, 1.442695
        %v2061 = vpow.pop %v2060
        %v2062 = vmul.f32 %v1785, 1.442695
        %v2063 = vpow.pop %v2062
        %v2064 = vmul.f32 %v1786, 1.442695
        %v2065 = vpow.pop %v2064
        %v2066 = vmul.f32 %v1787, 1.442695
        %v2067 = vpow.pop %v2066
        %v2068 = vmul.f32 %v1788, 1.442695
        %v2069 = vpow.pop %v2068
        %v2070 = vmul.f32 %v1789, 1.442695
        %v2071 = vpow.pop %v2070
        %v2072 = vmul.f32 %v1790, 1.442695
        %v2073 = vpow.pop %v2072
        %v2074 = vmul.f32 %v1791, 1.442695
        %v2075 = vpow.pop %v2074
        %v2076 = vmul.f32 %v1792, 1.442695
        %v2077 = vpow.pop %v2076
        %v2078 = vmul.f32 %v1793, 1.442695
        %v2079 = vpow.pop %v2078
        %v2080 = vmul.f32 %v1794, 1.442695
        %v2081 = vpow.pop %v2080
        %v2082 = vmul.f32 %v1795, 1.442695
        %v2083 = vpow.pop %v2082
        %v2084 = vmul.f32 %v1796, 1.442695
        %v2085 = vpow.pop %v2084
        %v2086 = vmul.f32 %v1797, 1.442695
        %v2087 = vpow.pop %v2086
        %v2088 = vmul.f32 %v1798, 1.442695
        %v2089 = vpow.pop %v2088
        %v2090 = vmul.f32 %v1799, 1.442695
        %v2091 = vpow.pop %v2090
        %v2092 = vmul.f32 %v1800, 1.442695
        %v2093 = vpow.pop %v2092
        %v2094 = vmul.f32 %v1801, 1.442695
        %v2095 = vpow.pop %v2094
        %v2096 = vmul.f32 %v1802, 1.442695
        %v2097 = vpow.pop %v2096
        %v2098 = vmul.f32 %v1803, 1.442695
        %v2099 = vpow.pop %v2098
        %v2100 = vmul.f32 %v1804, 1.442695
        %v2101 = vpow.pop %v2100
        %v2102 = vmul.f32 %v1805, 1.442695
        %v2103 = vpow.pop %v2102
        %v2104 = vmul.f32 %v1806, 1.442695
        %v2105 = vpow.pop %v2104
        %v2106 = vmul.f32 %v1807, 1.442695
        %v2107 = vpow.pop %v2106
        %v2108 = vmul.f32 %v1808, 1.442695
        %v2109 = vpow.pop %v2108
        %v2110 = vmul.f32 %v1809, 1.442695
        %v2111 = vpow.pop %v2110
        %v2112 = vmul.f32 %v1810, 1.442695
        %v2113 = vpow.pop %v2112
        %v2114 = vmul.f32 %v1811, 1.442695
        %v2115 = vpow.pop %v2114
        %v2116 = vmul.f32 %v1812, 1.442695
        %v2117 = vpow.pop %v2116
        %v2118 = vmul.f32 %v1813, 1.442695
        %v2119 = vpow.pop %v2118
        %v2120 = vmul.f32 %v1814, 1.442695
        %v2121 = vpow.pop %v2120
        %v2122 = vmul.f32 %v1815, 1.442695
        %v2123 = vpow.pop %v2122
        %v2124 = vmul.f32 %v1816, 1.442695
        %v2125 = vpow.pop %v2124
        %v2126 = vmul.f32 %v1817, 1.442695
        %v2127 = vpow.pop %v2126
        %v2128 = vmul.f32 %v1818, 1.442695
        %v2129 = vpow.pop %v2128
        %v2130 = vmul.f32 %v1819, 1.442695
        %v2131 = vpow.pop %v2130
        %v2132 = vmul.f32 %v1820, 1.442695
        %v2133 = vpow.pop %v2132
        %v2134 = vmul.f32 %v1821, 1.442695
        %v2135 = vpow.pop %v2134
        %v2136 = vmul.f32 %v1822, 1.442695
        %v2137 = vpow.pop %v2136
        %v2138 = vmul.f32 %v1823, 1.442695
        %v2139 = vpow.pop %v2138
        %v2140 = vmul.f32 %v1824, 1.442695
        %v2141 = vpow.pop %v2140
        %v2142 = vmul.f32 %v1825, 1.442695
        %v2143 = vpow.pop %v2142
        %v2144 = vmul.f32 %v1826, 1.442695
        %v2145 = vpow.pop %v2144
        %v2146 = vmul.f32 %v1827, 1.442695
        %v2147 = vpow.pop %v2146
        %v2148 = vmul.f32 %v1828, 1.442695
        %v2149 = vpow.pop %v2148
        %v2150 = vmul.f32 %v1829, 1.442695
        %v2151 = vpow.pop %v2150
        %v2152 = vmul.f32 %v1830, 1.442695
        %v2153 = vpow.pop %v2152
        %v2154 = vmul.f32 %v1831, 1.442695
        %v2155 = vpow.pop %v2154
        %v2156 = vmul.f32 %v1832, 1.442695
        %v2157 = vpow.pop %v2156
        %v2158 = vmul.f32 %v1833, 1.442695
        %v2159 = vpow.pop %v2158
        %v2160 = vmul.f32 %v1834, 1.442695
        %v2161 = vpow.pop %v2160
        %v2162 = vmul.f32 %v1835, 1.442695
        %v2163 = vpow.pop %v2162
        %v2164 = vmul.f32 %v1836, 1.442695
        %v2165 = vpow.pop %v2164
        %v2166 = vmul.f32 %v1837, 1.442695
        %v2167 = vpow.pop %v2166
        %v2168 = vmul.f32 %v1838, 1.442695
        %v2169 = vpow.pop %v2168
        %v2170 = vmul.f32 %v1839, 1.442695
        %v2171 = vpow.pop %v2170
        %v2172 = vmul.f32 %v1840, 1.442695
        %v2173 = vpow.pop %v2172
        %v2174 = vmul.f32 %v1841, 1.442695
        %v2175 = vpow.pop %v2174
        %v2176 = vmul.f32 %v1842, 1.442695
        %v2177 = vpow.pop %v2176
        %v2178 = vmul.f32 %v1843, 1.442695
        %v2179 = vpow.pop %v2178
        %v2180 = vmul.f32 %v1844, 1.442695
        %v2181 = vpow.pop %v2180
        %v2182 = vmul.f32 %v1845, 1.442695
        %v2183 = vpow.pop %v2182
        %v2184 = vmul.f32 %v1846, 1.442695
        %v2185 = vpow.pop %v2184
        %v2186 = vmul.f32 %v1847, 1.442695
        %v2187 = vpow.pop %v2186
        %v2188 = vmul.f32 %v1848, 1.442695
        %v2189 = vpow.pop %v2188
        %v2190 = vmul.f32 %v1849, 1.442695
        %v2191 = vpow.pop %v2190
        %v2192 = vmul.f32 %v1850, 1.442695
        %v2193 = vpow.pop %v2192
        %v2194 = vmul.f32 %v1851, 1.442695
        %v2195 = vpow.pop %v2194
        %v2196 = vmul.f32 %v1852, 1.442695
        %v2197 = vpow.pop %v2196
        %v2198 = vmul.f32 %v1853, 1.442695
        %v2199 = vpow.pop %v2198
        %v2200 = vmul.f32 %v1854, 1.442695
        %v2201 = vpow.pop %v2200
        %v2202 = vmul.f32 %v1855, 1.442695
        %v2203 = vpow.pop %v2202
        %v2204 = vmul.f32 %v1856, 1.442695
        %v2205 = vpow.pop %v2204
        %v2206 = vmul.f32 %v1857, 1.442695
        %v2207 = vpow.pop %v2206
        %v2208 = vmul.f32 %v1858, 1.442695
        %v2209 = vpow.pop %v2208
        %v2210 = vmul.f32 %v1859, 1.442695
        %v2211 = vpow.pop %v2210
        %v2212 = vmul.f32 %v1860, 1.442695
        %v2213 = vpow.pop %v2212
        %v2214 = vmul.f32 %v1861, 1.442695
        %v2215 = vpow.pop %v2214
        %v2216 = vmul.f32 %v1862, 1.442695
        %v2217 = vpow.pop %v2216
        %v2218 = vmul.f32 %v1863, 1.442695
        %v2219 = vpow.pop %v2218
        %v2220 = vmul.f32 %v1864, 1.442695
        %v2221 = vpow.pop %v2220
        %v2222 = vmul.f32 %v1865, 1.442695
        %v2223 = vpow.pop %v2222
        %v2224 = vmul.f32 %v1866, 1.442695
        %v2225 = vpow.pop %v2224
        %v2226 = vmul.f32 %v1867, 1.442695
        %v2227 = vpow.pop %v2226
        %v2228 = vmul.f32 %v1868, 1.442695
        %v2229 = vpow.pop %v2228
        %v2230 = vmul.f32 %v1869, 1.442695
        %v2231 = vpow.pop %v2230
        %v2232 = vmul.f32 %v1870, 1.442695
        %v2233 = vpow.pop %v2232
        %v2234 = vmul.f32 %v1871, 1.442695
        %v2235 = vpow.pop %v2234
        %v2236 = vmul.f32 %v1872, 1.442695
        %v2237 = vpow.pop %v2236
        %v2238 = vmul.f32 %v1873, 1.442695
        %v2239 = vpow.pop %v2238
        %v2240 = vmul.f32 %v1874, 1.442695
        %v2241 = vpow.pop %v2240
        %v2242 = vmul.f32 %v1875, 1.442695
        %v2243 = vpow.pop %v2242
        %v2244 = vmul.f32 %v1876, 1.442695
        %v2245 = vpow.pop %v2244
        %v2246 = vmul.f32 %v1877, 1.442695
        %v2247 = vpow.pop %v2246
        %v2248 = vmul.f32 %v1878, 1.442695
        %v2249 = vpow.pop %v2248
        %v2250 = vmul.f32 %v1879, 1.442695
        %v2251 = vpow.pop %v2250
        %v2252 = vmul.f32 %v1880, 1.442695
        %v2253 = vpow.pop %v2252
        %v2254 = vmul.f32 %v1881, 1.442695
        %v2255 = vpow.pop %v2254
        %v2256 = vmul.f32 %v1882, 1.442695
        %v2257 = vpow.pop %v2256
        %v2258 = vmul.f32 %v1883, 1.442695
        %v2259 = vpow.pop %v2258
        %v2260 = vmul.f32 %v1884, 1.442695
        %v2261 = vpow.pop %v2260
        %v2262 = vmul.f32 %v1885, 1.442695
        %v2263 = vpow.pop %v2262
        %v2264 = vmul.f32 %v1886, 1.442695
        %v2265 = vpow.pop %v2264
        %v2266 = vmul.f32 %v1887, 1.442695
        %v2267 = vpow.pop %v2266
        %v2268 = vmul.f32 %v1888, 1.442695
        %v2269 = vpow.pop %v2268
        %v2270 = vmul.f32 %v1889, 1.442695
        %v2271 = vpow.pop %v2270
        %v2272 = vmul.f32 %v1890, 1.442695
        %v2273 = vpow.pop %v2272
        %v2274 = vmul.f32 %v1891, 1.442695
        %v2275 = vpow.pop %v2274
        %v2276 = vmul.f32 %v1892, 1.442695
        %v2277 = vpow.pop %v2276
        %v2278 = vmul.f32 %v1893, 1.442695
        %v2279 = vpow.pop %v2278
        %v2280 = vmul.f32 %v1894, 1.442695
        %v2281 = vpow.pop %v2280
        %v2282 = vmul.f32 %v1895, 1.442695
        %v2283 = vpow.pop %v2282
        %v2284 = vmul.f32 %v1896, 1.442695
        %v2285 = vpow.pop %v2284
        %v2286 = vmul.f32 %v1897, 1.442695
        %v2287 = vpow.pop %v2286
        %v2288 = vmul.f32 %v1898, 1.442695
        %v2289 = vpow.pop %v2288
        %v2290 = vmul.f32 %v1899, 1.442695
        %v2291 = vpow.pop %v2290
        %v2292 = vmul.f32 %v1900, 1.442695
        %v2293 = vpow.pop %v2292
        %v2294 = vmul.f32 %v1901, 1.442695
        %v2295 = vpow.pop %v2294
        %v2296 = vmul.f32 %v1902, 1.442695
        %v2297 = vpow.pop %v2296
        %v2298 = vmul.f32 %v1903, 1.442695
        %v2299 = vpow.pop %v2298
        %v2300 = vmul.f32 %v1904, 1.442695
        %v2301 = vpow.pop %v2300
        %v2302 = vmul.f32 %v1905, 1.442695
        %v2303 = vpow.pop %v2302
        %v2304 = vmul.f32 %v1906, 1.442695
        %v2305 = vpow.pop %v2304
        %v2306 = vmul.f32 %v1907, 1.442695
        %v2307 = vpow.pop %v2306
        %v2308 = vmul.f32 %v1908, 1.442695
        %v2309 = vpow.pop %v2308
        %v2310 = vmul.f32 %v1909, 1.442695
        %v2311 = vpow.pop %v2310
        %v2312 = vmul.f32 %v1910, 1.442695
        %v2313 = vpow.pop %v2312
        %v2314 = vmul.f32 %v1911, 1.442695
        %v2315 = vpow.pop %v2314
        %v2316 = vmul.f32 %v1912, 1.442695
        %v2317 = vpow.pop %v2316
        %v2318 = vmul.f32 %v1913, 1.442695
        %v2319 = vpow.pop %v2318
        %v2320 = vmul.f32 %v1914, 1.442695
        %v2321 = vpow.pop %v2320
        %v2322 = vmul.f32 %v1915, 1.442695
        %v2323 = vpow.pop %v2322
        %v2324 = vmul.f32 %v1916, 1.442695
        %v2325 = vpow.pop %v2324
        %v2326 = vmul.f32 %v1917, 1.442695
        %v2327 = vpow.pop %v2326
        %v2328 = vmul.f32 %v1918, 1.442695
        %v2329 = vpow.pop %v2328
        %v2330 = vmul.f32 %v1919, 1.442695
        %v2331 = vpow.pop %v2330
        %v2332 = vmul.f32 %v1920, 1.442695
        %v2333 = vpow.pop %v2332
        %v2334 = vmul.f32 %v1921, 1.442695
        %v2335 = vpow.pop %v2334
        %v2336 = vmul.f32 %v1922, 1.442695
        %v2337 = vpow.pop %v2336
        %v2338 = vmul.f32 %v1923, 1.442695
        %v2339 = vpow.pop %v2338
        %v2340 = vmul.f32 %v1924, 1.442695
        %v2341 = vpow.pop %v2340
        %v2342 = vmul.f32 %v1925, 1.442695
        %v2343 = vpow.pop %v2342
        %v2344 = vmul.f32 %v1926, 1.442695
        %v2345 = vpow.pop %v2344
        %v2346 = vmul.f32 %v1927, 1.442695
        %v2347 = vpow.pop %v2346
        %v2348 = vmul.f32 %v1928, 1.442695
        %v2349 = vpow.pop %v2348
        %v2350 = vmul.f32 %v1929, 1.442695
        %v2351 = vpow.pop %v2350
        %v2352 = vmul.f32 %v1930, 1.442695
        %v2353 = vpow.pop %v2352
        %v2354 = vmul.f32 %v1931, 1.442695
        %v2355 = vpow.pop %v2354
        %v2356 = vmul.f32 %v1932, 1.442695
        %v2357 = vpow.pop %v2356
        %v2358 = vmul.f32 %v1933, 1.442695
        %v2359 = vpow.pop %v2358
        %v2360 = vmul.f32 %v1934, 1.442695
        %v2361 = vpow.pop %v2360
        %v2362 = vmul.f32 %v1935, 1.442695
        %v2363 = vpow.pop %v2362
        %v2364 = vmul.f32 %v1936, 1.442695
        %v2365 = vpow.pop %v2364
        %v2366 = vmul.f32 %v1937, 1.442695
        %v2367 = vpow.pop %v2366
        %v2368 = vmul.f32 %v1938, 1.442695
        %v2369 = vpow.pop %v2368
        %v2370 = vmul.f32 %v1939, 1.442695
        %v2371 = vpow.pop %v2370
        %v2372 = vmul.f32 %v1940, 1.442695
        %v2373 = vpow.pop %v2372
        %v2374 = vmul.f32 %v1941, 1.442695
        %v2375 = vpow.pop %v2374
        %v2376 = vmul.f32 %v1942, 1.442695
        %v2377 = vpow.pop %v2376
        %v2378 = vmul.f32 %v1943, 1.442695
        %v2379 = vpow.pop %v2378
        %v2380 = vmul.f32 %v1944, 1.442695
        %v2381 = vpow.pop %v2380
        %v2382 = vmul.f32 %v1945, 1.442695
        %v2383 = vpow.pop %v2382
        %v2384 = vmul.f32 %v1946, 1.442695
        %v2385 = vpow.pop %v2384
        %v2386 = vmul.f32 %v1947, 1.442695
        %v2387 = vpow.pop %v2386
        %v2388 = vmul.f32 %v1948, 1.442695
        %v2389 = vpow.pop %v2388
        %v2390 = vmul.f32 %v1949, 1.442695
        %v2391 = vpow.pop %v2390
        %v2392 = vmul.f32 %v1950, 1.442695
        %v2393 = vpow.pop %v2392
        %v2394 = vmul.f32 %v1951, 1.442695
        %v2395 = vpow.pop %v2394
        %v2396 = vmul.f32 %v1952, 1.442695
        %v2397 = vpow.pop %v2396
        %v2398 = vmul.f32 %v1953, 1.442695
        %v2399 = vpow.pop %v2398
        %v2400 = vmul.f32 %v1954, 1.442695
        %v2401 = vpow.pop %v2400
        %v2402 = vmul.f32 %v1955, 1.442695
        %v2403 = vpow.pop %v2402
        %v2404 = vmul.f32 %v1956, 1.442695
        %v2405 = vpow.pop %v2404
        %v2406 = vmul.f32 %v1957, 1.442695
        %v2407 = vpow.pop %v2406
        %v2408 = vmul.f32 %v1958, 1.442695
        %v2409 = vpow.pop %v2408
        %v2410 = vmul.f32 %v1959, 1.442695
        %v2411 = vpow.pop %v2410
        %v2412 = vmul.f32 %v1960, 1.442695
        %v2413 = vpow.pop %v2412
        %v2414 = vmul.f32 %v1961, 1.442695
        %v2415 = vpow.pop %v2414
        %v2416 = vmul.f32 %v1962, 1.442695
        %v2417 = vpow.pop %v2416
        %v2418 = vmul.f32 %v1963, 1.442695
        %v2419 = vpow.pop %v2418
        %v2420 = vmul.f32 %v1964, 1.442695
        %v2421 = vpow.pop %v2420
        %v2422 = vmul.f32 %v1965, 1.442695
        %v2423 = vpow.pop %v2422
        %v2424 = vmul.f32 %v1966, 1.442695
        %v2425 = vpow.pop %v2424
        %v2426 = vmul.f32 %v1967, 1.442695
        %v2427 = vpow.pop %v2426
        %v2428 = vmul.f32 %v1968, 1.442695
        %v2429 = vpow.pop %v2428
        %v2430 = vmul.f32 %v1969, 1.442695
        %v2431 = vpow.pop %v2430
        %v2432 = vmul.f32 %v1970, 1.442695
        %v2433 = vpow.pop %v2432
        %v2434 = vmul.f32 %v1971, 1.442695
        %v2435 = vpow.pop %v2434
        %v2436 = vmul.f32 %v1972, 1.442695
        %v2437 = vpow.pop %v2436
        %v2438 = vmul.f32 %v1973, 1.442695
        %v2439 = vpow.pop %v2438
        %v2440 = vmul.f32 %v1974, 1.442695
        %v2441 = vpow.pop %v2440
        %v2442 = vmul.f32 %v1975, 1.442695
        %v2443 = vpow.pop %v2442
        %v2444 = vmul.f32 %v1976, 1.442695
        %v2445 = vpow.pop %v2444
        %v2446 = vmul.f32 %v1977, 1.442695
        %v2447 = vpow.pop %v2446
        %v2448 = vmul.f32 %v1978, 1.442695
        %v2449 = vpow.pop %v2448
        %v2450 = vmul.f32 %v1979, 1.442695
        %v2451 = vpow.pop %v2450
        %v2452 = vmul.f32 %v1980, 1.442695
        %v2453 = vpow.pop %v2452
        %v2454 = vmul.f32 %v1981, 1.442695
        %v2455 = vpow.pop %v2454
        %v2456 = vmul.f32 %v1982, 1.442695
        %v2457 = vpow.pop %v2456
        %v2458 = vmul.f32 %v1983, 1.442695
        %v2459 = vpow.pop %v2458
        %v2460 = vmul.f32 %v1984, 1.442695
        %v2461 = vpow.pop %v2460
        %v2462 = vmul.f32 %v1985, 1.442695
        %v2463 = vpow.pop %v2462
        %v2464 = vmul.f32 %v1986, 1.442695
        %v2465 = vpow.pop %v2464
        %v2466 = vmul.f32 %v1987, 1.442695
        %v2467 = vpow.pop %v2466
        %v2468 = vmul.f32 %v1988, 1.442695
        %v2469 = vpow.pop %v2468
        %v2470 = vmul.f32 %v1989, 1.442695
        %v2471 = vpow.pop %v2470
        %v2472 = vmul.f32 %v1990, 1.442695
        %v2473 = vpow.pop %v2472
        %v2474 = vmul.f32 %v1991, 1.442695
        %v2475 = vpow.pop %v2474
        %v2476 = vmul.f32 %v1992, 1.442695
        %v2477 = vpow.pop %v2476
        %v2478 = vmul.f32 %v1993, 1.442695
        %v2479 = vpow.pop %v2478
        %v2480 = vmul.f32 %v1994, 1.442695
        %v2481 = vpow.pop %v2480
        %v2482 = vmul.f32 %v1995, 1.442695
        %v2483 = vpow.pop %v2482
        %v2484 = vmul.f32 %v1996, 1.442695
        %v2485 = vpow.pop %v2484
        %v2486 = vmul.f32 %v1997, 1.442695
        %v2487 = vpow.pop %v2486
        %v2488 = vmul.f32 %v1998, 1.442695
        %v2489 = vpow.pop %v2488
        %v2490 = vmul.f32 %v1999, 1.442695
        %v2491 = vpow.pop %v2490
        %v2492 = vmul.f32 %v2000, 1.442695
        %v2493 = vpow.pop %v2492
        %v2494 = vmul.f32 %v2001, 1.442695
        %v2495 = vpow.pop %v2494
        %v2496 = vmul.f32 %v2002, 1.442695
        %v2497 = vpow.pop %v2496
        %v2498 = vmul.f32 %v2003, 1.442695
        %v2499 = vpow.pop %v2498
        %v2500 = vmul.f32 %v2004, 1.442695
        %v2501 = vpow.pop %v2500
        %v2502 = vmul.f32 %v2005, 1.442695
        %v2503 = vpow.pop %v2502
        %v2504 = vmul.f32 %v2006, 1.442695
        %v2505 = vpow.pop %v2504
        %v2506 = vmul.f32 %v2007, 1.442695
        %v2507 = vpow.pop %v2506
        %v2508 = vmul.f32 %v2008, 1.442695
        %v2509 = vpow.pop %v2508
        %v2510 = vmul.f32 %v2009, 1.442695
        %v2511 = vpow.pop %v2510
        %v2512 = vmul.f32 %v2010, 1.442695
        %v2513 = vpow.pop %v2512
        %v2514 = vmul.f32 %v2011, 1.442695
        %v2515 = vpow.pop %v2514
        %v2516 = vmul.f32 %v2012, 1.442695
        %v2517 = vpow.pop %v2516
        %v2518 = vmul.f32 %v2013, 1.442695
        %v2519 = vpow.pop %v2518
        %v2520 = vmul.f32 %v2014, 1.442695
        %v2521 = vpow.pop %v2520
        %v2522 = vmul.f32 %v2015, 1.442695
        %v2523 = vpow.pop %v2522
        %v2524 = vmul.f32 %v2016, 1.442695
        %v2525 = vpow.pop %v2524
        %v2526 = vmul.f32 %v2017, 1.442695
        %v2527 = vpow.pop %v2526
        %v2528 = vmul.f32 %v2018, 1.442695
        %v2529 = vpow.pop %v2528
        %v2530 = vmul.f32 %v2019, 1.442695
        %v2531 = vpow.pop %v2530
        %v2532 = vld [vmem:[%s342] sm:$0xff]
        %v2533 = vld [vmem:[%s342 + $0x8] sm:$0xff]
        %v2534 = vld [vmem:[%s342 + $0x10] sm:$0x11]
        %v2535 = vld [vmem:[%s342 + $0x18] sm:$0x11]
        %v2536 = vpack.c.bf16 %v2029, %v2021
        %v2537 = vpack.c.bf16 %v2031, %v2023
        %v2538 = vpack.c.bf16 %v2033, %v2025
        %v2539 = vpack.c.bf16 %v2035, %v2027
        %v2540 = vpack.c.bf16 %v2045, %v2037
        %v2541 = vpack.c.bf16 %v2047, %v2039
        %v2542 = vpack.c.bf16 %v2049, %v2041
        %v2543 = vpack.c.bf16 %v2051, %v2043
        %v2544 = vpack.c.bf16 %v2061, %v2053
        %v2545 = vpack.c.bf16 %v2063, %v2055
        %v2546 = vpack.c.bf16 %v2065, %v2057
        %v2547 = vpack.c.bf16 %v2067, %v2059
        %v2548 = vpack.c.bf16 %v2077, %v2069
        %v2549 = vpack.c.bf16 %v2079, %v2071
        %v2550 = vpack.c.bf16 %v2081, %v2073
        %v2551 = vpack.c.bf16 %v2083, %v2075
        %v2552 = vpack.c.bf16 %v2093, %v2085
        %v2553 = vpack.c.bf16 %v2095, %v2087
        %v2554 = vpack.c.bf16 %v2097, %v2089
        %v2555 = vpack.c.bf16 %v2099, %v2091
        %v2556 = vpack.c.bf16 %v2109, %v2101
        %v2557 = vpack.c.bf16 %v2111, %v2103
        %v2558 = vpack.c.bf16 %v2113, %v2105
        %v2559 = vpack.c.bf16 %v2115, %v2107
        %v2560 = vpack.c.bf16 %v2125, %v2117
        %v2561 = vpack.c.bf16 %v2127, %v2119
        %v2562 = vpack.c.bf16 %v2129, %v2121
        %v2563 = vpack.c.bf16 %v2131, %v2123
        %v2564 = vpack.c.bf16 %v2141, %v2133
        %v2565 = vpack.c.bf16 %v2143, %v2135
        %v2566 = vpack.c.bf16 %v2145, %v2137
        %v2567 = vpack.c.bf16 %v2147, %v2139
        %v2568 = vpack.c.bf16 %v2157, %v2149
        %v2569 = vpack.c.bf16 %v2159, %v2151
        %v2570 = vpack.c.bf16 %v2161, %v2153
        %v2571 = vpack.c.bf16 %v2163, %v2155
        %v2572 = vpack.c.bf16 %v2173, %v2165
        %v2573 = vpack.c.bf16 %v2175, %v2167
        %v2574 = vpack.c.bf16 %v2177, %v2169
        %v2575 = vpack.c.bf16 %v2179, %v2171
        %v2576 = vpack.c.bf16 %v2189, %v2181
        %v2577 = vpack.c.bf16 %v2191, %v2183
        %v2578 = vpack.c.bf16 %v2193, %v2185
        %v2579 = vpack.c.bf16 %v2195, %v2187
        %v2580 = vpack.c.bf16 %v2205, %v2197
        %v2581 = vpack.c.bf16 %v2207, %v2199
        %v2582 = vpack.c.bf16 %v2209, %v2201
        %v2583 = vpack.c.bf16 %v2211, %v2203
        %v2584 = vpack.c.bf16 %v2221, %v2213
        %v2585 = vpack.c.bf16 %v2223, %v2215
        %v2586 = vpack.c.bf16 %v2225, %v2217
        %v2587 = vpack.c.bf16 %v2227, %v2219
        %v2588 = vpack.c.bf16 %v2237, %v2229
        %v2589 = vpack.c.bf16 %v2239, %v2231
        %v2590 = vpack.c.bf16 %v2241, %v2233
        %v2591 = vpack.c.bf16 %v2243, %v2235
        %v2592 = vpack.c.bf16 %v2253, %v2245
        %v2593 = vpack.c.bf16 %v2255, %v2247
        %v2594 = vpack.c.bf16 %v2257, %v2249
        %v2595 = vpack.c.bf16 %v2259, %v2251
        %v2596 = vpack.c.bf16 %v2269, %v2261
        %v2597 = vpack.c.bf16 %v2271, %v2263
        %v2598 = vpack.c.bf16 %v2273, %v2265
        %v2599 = vpack.c.bf16 %v2275, %v2267
        %v2600 = vpack.c.bf16 %v2285, %v2277
        %v2601 = vpack.c.bf16 %v2287, %v2279
        %v2602 = vpack.c.bf16 %v2289, %v2281
        %v2603 = vpack.c.bf16 %v2291, %v2283
        %v2604 = vpack.c.bf16 %v2301, %v2293
        %v2605 = vpack.c.bf16 %v2303, %v2295
        %v2606 = vpack.c.bf16 %v2305, %v2297
        %v2607 = vpack.c.bf16 %v2307, %v2299
        %v2608 = vpack.c.bf16 %v2317, %v2309
        %v2609 = vpack.c.bf16 %v2319, %v2311
        %v2610 = vpack.c.bf16 %v2321, %v2313
        %v2611 = vpack.c.bf16 %v2323, %v2315
        %v2612 = vpack.c.bf16 %v2333, %v2325
        %v2613 = vpack.c.bf16 %v2335, %v2327
        %v2614 = vpack.c.bf16 %v2337, %v2329
        %v2615 = vpack.c.bf16 %v2339, %v2331
        %v2616 = vpack.c.bf16 %v2349, %v2341
        %v2617 = vpack.c.bf16 %v2351, %v2343
        %v2618 = vpack.c.bf16 %v2353, %v2345
        %v2619 = vpack.c.bf16 %v2355, %v2347
        %v2620 = vpack.c.bf16 %v2365, %v2357
        %v2621 = vpack.c.bf16 %v2367, %v2359
        %v2622 = vpack.c.bf16 %v2369, %v2361
        %v2623 = vpack.c.bf16 %v2371, %v2363
        %v2624 = vpack.c.bf16 %v2381, %v2373
        %v2625 = vpack.c.bf16 %v2383, %v2375
        %v2626 = vpack.c.bf16 %v2385, %v2377
        %v2627 = vpack.c.bf16 %v2387, %v2379
        %v2628 = vpack.c.bf16 %v2397, %v2389
        %v2629 = vpack.c.bf16 %v2399, %v2391
        %v2630 = vpack.c.bf16 %v2401, %v2393
        %v2631 = vpack.c.bf16 %v2403, %v2395
        %v2632 = vpack.c.bf16 %v2413, %v2405
        %v2633 = vpack.c.bf16 %v2415, %v2407
        %v2634 = vpack.c.bf16 %v2417, %v2409
        %v2635 = vpack.c.bf16 %v2419, %v2411
        %v2636 = vpack.c.bf16 %v2429, %v2421
        %v2637 = vpack.c.bf16 %v2431, %v2423
        %v2638 = vpack.c.bf16 %v2433, %v2425
        %v2639 = vpack.c.bf16 %v2435, %v2427
        %v2640 = vpack.c.bf16 %v2445, %v2437
        %v2641 = vpack.c.bf16 %v2447, %v2439
        %v2642 = vpack.c.bf16 %v2449, %v2441
        %v2643 = vpack.c.bf16 %v2451, %v2443
        %v2644 = vpack.c.bf16 %v2461, %v2453
        %v2645 = vpack.c.bf16 %v2463, %v2455
        %v2646 = vpack.c.bf16 %v2465, %v2457
        %v2647 = vpack.c.bf16 %v2467, %v2459
        %v2648 = vpack.c.bf16 %v2477, %v2469
        %v2649 = vpack.c.bf16 %v2479, %v2471
        %v2650 = vpack.c.bf16 %v2481, %v2473
        %v2651 = vpack.c.bf16 %v2483, %v2475
        %v2652 = vpack.c.bf16 %v2493, %v2485
        %v2653 = vpack.c.bf16 %v2495, %v2487
        %v2654 = vpack.c.bf16 %v2497, %v2489
        %v2655 = vpack.c.bf16 %v2499, %v2491
        %v2656 = vpack.c.bf16 %v2509, %v2501
        %v2657 = vpack.c.bf16 %v2511, %v2503
        %v2658 = vpack.c.bf16 %v2513, %v2505
        %v2659 = vpack.c.bf16 %v2515, %v2507
        %v2660 = vpack.c.bf16 %v2525, %v2517
        %v2661 = vpack.c.bf16 %v2527, %v2519
        %v2662 = vpack.c.bf16 %v2529, %v2521
        %v2663 = vpack.c.bf16 %v2531, %v2523
        %v2668 = vunpack.c.l.b16 %v2532
        %v2669 = vunpack.c.h.b16 %v2532
        %v2670 = vunpack.c.l.b16 %v2533
        %v2671 = vunpack.c.h.b16 %v2533
        %v2672 = vunpack.c.l.b16 %v2534
        %v2673 = vunpack.c.h.b16 %v2534
        %v2674 = vunpack.c.l.b16 %v2535
        %v2675 = vunpack.c.h.b16 %v2535
        %v2676 = vpack.c.b16 %v2672, %v2668
        %v2677 = vpack.c.b16 %v2673, %v2669
        %v2678 = vpack.c.b16 %v2674, %v2670
        %v2679 = vpack.c.b16 %v2675, %v2671
        %2684 = vmatprep.subr.bf16.mxu0 %v2565
        %2685 = vmatpush1.bf16.msra.mxu0 %v2564
        %2686 = vmatprep.subr.bf16.mxu0 %v2561
        %2687 = vmatpush1.bf16.msra.mxu0 %v2560
        %2688 = vmatprep.subr.bf16.mxu0 %v2557
        %2689 = vmatpush1.bf16.msra.mxu0 %v2556
        %2690 = vmatprep.subr.bf16.mxu0 %v2553
        %2691 = vmatpush1.bf16.msra.mxu0 %v2552
        %2692 = vmatprep.subr.bf16.mxu0 %v2549
        %2693 = vmatpush1.bf16.msra.mxu0 %v2548
        %2694 = vmatprep.subr.bf16.mxu0 %v2545
        %2695 = vmatpush1.bf16.msra.mxu0 %v2544
        %2696 = vmatprep.subr.bf16.mxu0 %v2541
        %2697 = vmatpush1.bf16.msra.mxu0 %v2540
        %2698 = vmatprep.subr.bf16.mxu0 %v2537
        %2699 = vmatpush1.bf16.msra.mxu0 %v2536
        %2700 = vmatprep.subr.bf16.mxu0 %v2597
        %2701 = vmatpush2.bf16.msra.mxu0 %v2596
        %2702 = vmatprep.subr.bf16.mxu0 %v2593
        %2703 = vmatpush2.bf16.msra.mxu0 %v2592
        %2704 = vmatprep.subr.bf16.mxu0 %v2589
        %2705 = vmatpush2.bf16.msra.mxu0 %v2588
        %2706 = vmatprep.subr.bf16.mxu0 %v2585
        %2707 = vmatpush2.bf16.msra.mxu0 %v2584
        %2708 = vmatprep.subr.bf16.mxu0 %v2581
        %2709 = vmatpush2.bf16.msra.mxu0 %v2580
        %2710 = vmatprep.subr.bf16.mxu0 %v2577
        %2711 = vmatpush2.bf16.msra.mxu0 %v2576
        %2712 = vmatprep.subr.bf16.mxu0 %v2573
        %2713 = vmatpush2.bf16.msra.mxu0 %v2572
        %2714 = vmatprep.subr.bf16.mxu0 %v2569
        %2715 = vmatpush2.bf16.msra.mxu0 %v2568
        %2716 = vmatprep.mubr.bf16.mxu0 %v2677
        %2717 = vmatmul.mubr.bf16.gmra.mxu0 %v2676
        %v2718 = vpop.f32.mrf.mxu0
        %v2719 = vadd.f32 0.0, %v2718
        %v2720 = vpop.f32.mrf.mxu0
        %v2721 = vadd.f32 0.0, %v2720
        %v2722 = vpop.f32.mrf.mxu0
        %v2723 = vadd.f32 0.0, %v2722
        %v2724 = vpop.f32.mrf.mxu0
        %v2725 = vadd.f32 0.0, %v2724
        %2726 = vdwg.mxu0
        %2727 = vmatprep.subr.bf16.mxu0 %v2629
        %2728 = vmatpush1.bf16.msra.mxu0 %v2628
        %2729 = vmatprep.subr.bf16.mxu0 %v2625
        %2730 = vmatpush1.bf16.msra.mxu0 %v2624
        %2731 = vmatprep.subr.bf16.mxu0 %v2621
        %2732 = vmatpush1.bf16.msra.mxu0 %v2620
        %2733 = vmatprep.subr.bf16.mxu0 %v2617
        %2734 = vmatpush1.bf16.msra.mxu0 %v2616
        %2735 = vmatprep.subr.bf16.mxu0 %v2613
        %2736 = vmatpush1.bf16.msra.mxu0 %v2612
        %2737 = vmatprep.subr.bf16.mxu0 %v2609
        %2738 = vmatpush1.bf16.msra.mxu0 %v2608
        %2739 = vmatprep.subr.bf16.mxu0 %v2605
        %2740 = vmatpush1.bf16.msra.mxu0 %v2604
        %2741 = vmatprep.subr.bf16.mxu0 %v2601
        %2742 = vmatpush1.bf16.msra.mxu0 %v2600
        %2743 = vmatprep.subr.bf16.mxu0 %v2661
        %2744 = vmatpush2.bf16.msra.mxu0 %v2660
        %2745 = vmatprep.subr.bf16.mxu0 %v2657
        %2746 = vmatpush2.bf16.msra.mxu0 %v2656
        %2747 = vmatprep.subr.bf16.mxu0 %v2653
        %2748 = vmatpush2.bf16.msra.mxu0 %v2652
        %2749 = vmatprep.subr.bf16.mxu0 %v2649
        %2750 = vmatpush2.bf16.msra.mxu0 %v2648
        %2751 = vmatprep.subr.bf16.mxu0 %v2645
        %2752 = vmatpush2.bf16.msra.mxu0 %v2644
        %2753 = vmatprep.subr.bf16.mxu0 %v2641
        %2754 = vmatpush2.bf16.msra.mxu0 %v2640
        %2755 = vmatprep.subr.bf16.mxu0 %v2637
        %2756 = vmatpush2.bf16.msra.mxu0 %v2636
        %2757 = vmatprep.subr.bf16.mxu0 %v2633
        %2758 = vmatpush2.bf16.msra.mxu0 %v2632
        %2759 = vmatprep.mubr.bf16.mxu0 %v2679
        %2760 = vmatmul.mubr.bf16.gmra.mxu0 %v2678
        %v2761 = vpop.f32.mrf.mxu0
        %v2762 = vadd.f32 %v2719, %v2761
        %v2763 = vpop.f32.mrf.mxu0
        %v2764 = vadd.f32 %v2721, %v2763
        %v2765 = vpop.f32.mrf.mxu0
        %v2766 = vadd.f32 %v2723, %v2765
        %v2767 = vpop.f32.mrf.mxu0
        %v2768 = vadd.f32 %v2725, %v2767
        %2769 = vdwg.mxu0
        %2770 = vmatprep.subr.bf16.mxu0 %v2567
        %2771 = vmatpush1.bf16.msra.mxu0 %v2566
        %2772 = vmatprep.subr.bf16.mxu0 %v2563
        %2773 = vmatpush1.bf16.msra.mxu0 %v2562
        %2774 = vmatprep.subr.bf16.mxu0 %v2559
        %2775 = vmatpush1.bf16.msra.mxu0 %v2558
        %2776 = vmatprep.subr.bf16.mxu0 %v2555
        %2777 = vmatpush1.bf16.msra.mxu0 %v2554
        %2778 = vmatprep.subr.bf16.mxu0 %v2551
        %2779 = vmatpush1.bf16.msra.mxu0 %v2550
        %2780 = vmatprep.subr.bf16.mxu0 %v2547
        %2781 = vmatpush1.bf16.msra.mxu0 %v2546
        %2782 = vmatprep.subr.bf16.mxu0 %v2543
        %2783 = vmatpush1.bf16.msra.mxu0 %v2542
        %2784 = vmatprep.subr.bf16.mxu0 %v2539
        %2785 = vmatpush1.bf16.msra.mxu0 %v2538
        %2786 = vmatprep.subr.bf16.mxu0 %v2599
        %2787 = vmatpush2.bf16.msra.mxu0 %v2598
        %2788 = vmatprep.subr.bf16.mxu0 %v2595
        %2789 = vmatpush2.bf16.msra.mxu0 %v2594
        %2790 = vmatprep.subr.bf16.mxu0 %v2591
        %2791 = vmatpush2.bf16.msra.mxu0 %v2590
        %2792 = vmatprep.subr.bf16.mxu0 %v2587
        %2793 = vmatpush2.bf16.msra.mxu0 %v2586
        %2794 = vmatprep.subr.bf16.mxu0 %v2583
        %2795 = vmatpush2.bf16.msra.mxu0 %v2582
        %2796 = vmatprep.subr.bf16.mxu0 %v2579
        %2797 = vmatpush2.bf16.msra.mxu0 %v2578
        %2798 = vmatprep.subr.bf16.mxu0 %v2575
        %2799 = vmatpush2.bf16.msra.mxu0 %v2574
        %2800 = vmatprep.subr.bf16.mxu0 %v2571
        %2801 = vmatpush2.bf16.msra.mxu0 %v2570
        %2802 = vmatprep.mubr.bf16.mxu0 %v2677
        %2803 = vmatmul.mubr.bf16.gmra.mxu0 %v2676
        %v2804 = vpop.f32.mrf.mxu0
        %v2805 = vadd.f32 0.0, %v2804
        %v2806 = vpop.f32.mrf.mxu0
        %v2807 = vadd.f32 0.0, %v2806
        %v2808 = vpop.f32.mrf.mxu0
        %v2809 = vadd.f32 0.0, %v2808
        %v2810 = vpop.f32.mrf.mxu0
        %v2811 = vadd.f32 0.0, %v2810
        %2812 = vdwg.mxu0
        %2813 = vmatprep.subr.bf16.mxu0 %v2631
        %2814 = vmatpush1.bf16.msra.mxu0 %v2630
        %2815 = vmatprep.subr.bf16.mxu0 %v2627
        %2816 = vmatpush1.bf16.msra.mxu0 %v2626
        %2817 = vmatprep.subr.bf16.mxu0 %v2623
        %2818 = vmatpush1.bf16.msra.mxu0 %v2622
        %2819 = vmatprep.subr.bf16.mxu0 %v2619
        %2820 = vmatpush1.bf16.msra.mxu0 %v2618
        %2821 = vmatprep.subr.bf16.mxu0 %v2615
        %2822 = vmatpush1.bf16.msra.mxu0 %v2614
        %2823 = vmatprep.subr.bf16.mxu0 %v2611
        %2824 = vmatpush1.bf16.msra.mxu0 %v2610
        %2825 = vmatprep.subr.bf16.mxu0 %v2607
        %2826 = vmatpush1.bf16.msra.mxu0 %v2606
        %2827 = vmatprep.subr.bf16.mxu0 %v2603
        %2828 = vmatpush1.bf16.msra.mxu0 %v2602
        %2829 = vmatprep.subr.bf16.mxu0 %v2663
        %2830 = vmatpush2.bf16.msra.mxu0 %v2662
        %2831 = vmatprep.subr.bf16.mxu0 %v2659
        %2832 = vmatpush2.bf16.msra.mxu0 %v2658
        %2833 = vmatprep.subr.bf16.mxu0 %v2655
        %2834 = vmatpush2.bf16.msra.mxu0 %v2654
        %2835 = vmatprep.subr.bf16.mxu0 %v2651
        %2836 = vmatpush2.bf16.msra.mxu0 %v2650
        %2837 = vmatprep.subr.bf16.mxu0 %v2647
        %2838 = vmatpush2.bf16.msra.mxu0 %v2646
        %2839 = vmatprep.subr.bf16.mxu0 %v2643
        %2840 = vmatpush2.bf16.msra.mxu0 %v2642
        %2841 = vmatprep.subr.bf16.mxu0 %v2639
        %2842 = vmatpush2.bf16.msra.mxu0 %v2638
        %2843 = vmatprep.subr.bf16.mxu0 %v2635
        %2844 = vmatpush2.bf16.msra.mxu0 %v2634
        %2845 = vmatprep.mubr.bf16.mxu0 %v2679
        %2846 = vmatmul.mubr.bf16.gmra.mxu0 %v2678
        %v2847 = vpop.f32.mrf.mxu0
        %v2848 = vadd.f32 %v2805, %v2847
        %v2849 = vpop.f32.mrf.mxu0
        %v2850 = vadd.f32 %v2807, %v2849
        %v2851 = vpop.f32.mrf.mxu0
        %v2852 = vadd.f32 %v2809, %v2851
        %v2853 = vpop.f32.mrf.mxu0
        %v2854 = vadd.f32 %v2811, %v2853
        %2855 = vdwg.mxu0
        %v2856 = vrcp.pop %v2766
        %v2857 = vrcp.pop %v2768
        %v2858 = vrcp.pop %v2852
        %v2859 = vrcp.pop %v2854
        %v2860 = vlaneseq
        %v2861 = vshrl.u32 %v2860, 7
        %v2862 = vsub.s32 0, %v2861
        %v2863 = vrot.slane %v2856, %v2862
        %v2864 = vlaneseq
        %v2865 = vshrl.u32 %v2864, 7
        %v2866 = vsub.s32 0, %v2865
        %v2867 = vrot.slane %v2857, %v2866
        %v2868 = vlaneseq
        %v2869 = vshrl.u32 %v2868, 7
        %v2870 = vsub.s32 0, %v2869
        %v2871 = vrot.slane %v2858, %v2870
        %v2872 = vlaneseq
        %v2873 = vshrl.u32 %v2872, 7
        %v2874 = vsub.s32 0, %v2873
        %v2875 = vrot.slane %v2859, %v2874
        %v2876 = vmul.f32 %v2762, %v2863
        %v2877 = vmul.f32 %v2764, %v2867
        %v2878 = vmul.f32 %v2848, %v2871
        %v2879 = vmul.f32 %v2850, %v2875
        %v2880 = vpack.c.bf16 %v2876, %v2876
        %v2881 = vpack.c.bf16 %v2877, %v2877
        %v2882 = vpack.c.bf16 %v2878, %v2878
        %v2883 = vpack.c.bf16 %v2879, %v2879
        %v2884 = vld [vmem:[%s4] sm:$0xf]
        %v2885 = vld [vmem:[%s4 + $0x4] sm:$0xf]
        %v2888 = vunpack.c.l.b16 %v2884
        %v2889 = vunpack.c.l.b16 %v2885
        %v2890 = vpack.c.b16 %v2889, %v2888
        %v2892 = vsel %vm672, %v2890, 0
        %v2895 = vsel %vm769, %v2880, 0
        %v2898 = vsel %vm769, %v2881, 0
        %v2901 = vsel %vm769, %v2882, 0
        %v2904 = vsel %vm769, %v2883, 0
        %2906 = vmatprep.subr.bf16.mxu0 0
        %2907 = vmatpush1.bf16.msra.mxu0 0
        %2908 = vmatprep.subr.bf16.mxu0 0
        %2909 = vmatpush1.bf16.msra.mxu0 0
        %2910 = vmatprep.subr.bf16.mxu0 0
        %2911 = vmatpush1.bf16.msra.mxu0 0
        %2912 = vmatprep.subr.bf16.mxu0 0
        %2913 = vmatpush1.bf16.msra.mxu0 0
        %2914 = vmatprep.subr.bf16.mxu0 0
        %2915 = vmatpush1.bf16.msra.mxu0 0
        %2916 = vmatprep.subr.bf16.mxu0 0
        %2917 = vmatpush1.bf16.msra.mxu0 0
        %2918 = vmatprep.subr.bf16.mxu0 0
        %2919 = vmatpush1.bf16.msra.mxu0 0
        %2920 = vmatprep.subr.bf16.mxu0 %v2898
        %2921 = vmatpush1.bf16.msra.mxu0 %v2895
        %2922 = vmatprep.subr.bf16.mxu0 0
        %2923 = vmatpush2.bf16.msra.mxu0 0
        %2924 = vmatprep.subr.bf16.mxu0 0
        %2925 = vmatpush2.bf16.msra.mxu0 0
        %2926 = vmatprep.subr.bf16.mxu0 0
        %2927 = vmatpush2.bf16.msra.mxu0 0
        %2928 = vmatprep.subr.bf16.mxu0 0
        %2929 = vmatpush2.bf16.msra.mxu0 0
        %2930 = vmatprep.subr.bf16.mxu0 0
        %2931 = vmatpush2.bf16.msra.mxu0 0
        %2932 = vmatprep.subr.bf16.mxu0 0
        %2933 = vmatpush2.bf16.msra.mxu0 0
        %2934 = vmatprep.subr.bf16.mxu0 0
        %2935 = vmatpush2.bf16.msra.mxu0 0
        %2936 = vmatprep.subr.bf16.mxu0 0
        %2937 = vmatpush2.bf16.msra.mxu0 0
        %2938 = vmatprep.mubr.bf16.mxu0 0
        %2939 = vmatmul.mubr.bf16.gmra.mxu0 %v2892
        %v2940 = vpop.f32.mrf.mxu0
        %v2941 = vadd.f32 0.0, %v2940
        %v2942 = vpop.f32.mrf.mxu0
        %v2943 = vadd.f32 0.0, %v2942
        %v2944 = vpop.f32.mrf.mxu0
        %v2945 = vadd.f32 0.0, %v2944
        %v2946 = vpop.f32.mrf.mxu0
        %v2947 = vadd.f32 0.0, %v2946
        %2948 = vdwg.mxu0
        %2949 = vmatprep.subr.bf16.mxu0 0
        %2950 = vmatpush1.bf16.msra.mxu0 0
        %2951 = vmatprep.subr.bf16.mxu0 0
        %2952 = vmatpush1.bf16.msra.mxu0 0
        %2953 = vmatprep.subr.bf16.mxu0 0
        %2954 = vmatpush1.bf16.msra.mxu0 0
        %2955 = vmatprep.subr.bf16.mxu0 0
        %2956 = vmatpush1.bf16.msra.mxu0 0
        %2957 = vmatprep.subr.bf16.mxu0 0
        %2958 = vmatpush1.bf16.msra.mxu0 0
        %2959 = vmatprep.subr.bf16.mxu0 0
        %2960 = vmatpush1.bf16.msra.mxu0 0
        %2961 = vmatprep.subr.bf16.mxu0 0
        %2962 = vmatpush1.bf16.msra.mxu0 0
        %2963 = vmatprep.subr.bf16.mxu0 %v2904
        %2964 = vmatpush1.bf16.msra.mxu0 %v2901
        %2965 = vmatprep.subr.bf16.mxu0 0
        %2966 = vmatpush2.bf16.msra.mxu0 0
        %2967 = vmatprep.subr.bf16.mxu0 0
        %2968 = vmatpush2.bf16.msra.mxu0 0
        %2969 = vmatprep.subr.bf16.mxu0 0
        %2970 = vmatpush2.bf16.msra.mxu0 0
        %2971 = vmatprep.subr.bf16.mxu0 0
        %2972 = vmatpush2.bf16.msra.mxu0 0
        %2973 = vmatprep.subr.bf16.mxu0 0
        %2974 = vmatpush2.bf16.msra.mxu0 0
        %2975 = vmatprep.subr.bf16.mxu0 0
        %2976 = vmatpush2.bf16.msra.mxu0 0
        %2977 = vmatprep.subr.bf16.mxu0 0
        %2978 = vmatpush2.bf16.msra.mxu0 0
        %2979 = vmatprep.subr.bf16.mxu0 0
        %2980 = vmatpush2.bf16.msra.mxu0 0
        %2981 = vmatprep.mubr.bf16.mxu0 0
        %2982 = vmatmul.mubr.bf16.gmra.mxu0 %v2892
        %v2983 = vpop.f32.mrf.mxu0
        %v2984 = vadd.f32 0.0, %v2983
        %v2985 = vpop.f32.mrf.mxu0
        %v2986 = vadd.f32 0.0, %v2985
        %v2987 = vpop.f32.mrf.mxu0
        %v2988 = vadd.f32 0.0, %v2987
        %v2989 = vpop.f32.mrf.mxu0
        %v2990 = vadd.f32 0.0, %v2989
        %2991 = vdwg.mxu0
        %v2992 = vadd.f32 %v345, %v2941
        %v2993 = vadd.f32 %v346, %v2943
        %v2994 = vadd.f32 %v347, %v2984
        %v2995 = vadd.f32 %v348, %v2986
        %v2996 = vadd.f32 %v349, %v2945
        %v2997 = vadd.f32 %v350, %v2947
        %v2998 = vadd.f32 %v351, %v2988
        %v2999 = vadd.f32 %v352, %v2990
        %v3000 = vld [vmem:[%s5] sm:$0xff]
        %v3001 = vld [vmem:[%s5 + $0x8] sm:$0xff]
        %3003 = vset.pattern.permute.xlu0 0
        %3004 = vperm.xlu0 %3003, %v3000
        %v3005 = vpop.permute.xlu0 %3004
        %3008 = vset.pattern.permute.xlu0 0
        %3009 = vperm.xlu0 %3008, %v3001
        %v3010 = vpop.permute.xlu0 %3009
        %v3012 = vadd.f32 %v2992, %v3005
        %v3013 = vadd.f32 %v2993, %v3005
        %v3014 = vadd.f32 %v2994, %v3005
        %v3015 = vadd.f32 %v2995, %v3005
        %v3016 = vadd.f32 %v2996, %v3010
        %v3017 = vadd.f32 %v2997, %v3010
        %v3018 = vadd.f32 %v2998, %v3010
        %v3019 = vadd.f32 %v2999, %v3010
        %3020 = vst [vmem:[%s331] sm:$0xff] %v3012
        %3021 = vst [vmem:[%s331 + $0x8] sm:$0xff] %v3013
        %3022 = vst [vmem:[%s331 + $0x10] sm:$0xff] %v3014
        %3023 = vst [vmem:[%s331 + $0x18] sm:$0xff] %v3015
        %3024 = vst [vmem:[%s331 + $0x20] sm:$0xff] %v3016
        %3025 = vst [vmem:[%s331 + $0x28] sm:$0xff] %v3017
        %3026 = vst [vmem:[%s331 + $0x30] sm:$0xff] %v3018
        %3027 = vst [vmem:[%s331 + $0x38] sm:$0xff] %v3019
        %s3028 = sand.u32 %s185, 1
        %s3029 = scalar_lea.sflag [#allocation4], %s3028
        %s3030 = sand.u32 %s185, 1
        %s3031 = smul.addr %s3030, 64
        %s3032 = scalar_lea.vmem [#allocation3], %s3031
        // Predicated region
        $region68: #{tpu_custom_call.1} parent=62 // pred_check
          %p3033 = pneg %p195
        $region69: #{tpu_custom_call.1} parent=62 // pred_check_branch
          %3035 = sbr.rel (%p3033) target = $region71
        $region70: #{tpu_custom_call.1} parent=62 // pred_region
          %s3036 = smul.u32 4, %s25
          %s3038 = ssub.s32 1024, 1024
          %3039 = vsyncadd %s3029, %s3038
          %s3040 = smul.addr %s24, 16
          %s3041 = sadd.s32 %s3036, %s3040
          %s3042 = smul.addr %s3041, 128
          %s3043 = scalar_lea.hbm %s6, %s3042
          %s3044 = sshll.u32 %s3032, 4
          %s3045 = int_to_ptr.vmem [resolvable:$true] %s3044
          %3050 = dma.vmem_to_hbm [thread:$0]  %s3045, 1024, %s3043, %s3029, 512, 1024, 32
        $region71: #{tpu_custom_call.1} parent=62 // pred_fallthru
          _
      $region63: #{tpu_custom_call.1} parent=5 // pred_fallthru
        _
      %p3051 = scmp.le.s32.totalorder 2, %s15
      // Predicated region
      $region72: #{tpu_custom_call.1} parent=5 // pred_check
        %p3052 = pneg %p3051
      $region73: #{tpu_custom_call.1} parent=5 // pred_check_branch
        %3054 = sbr.rel (%p3052) target = $region75
      $region74: #{tpu_custom_call.1} parent=5 // pred_region
        %s3055 = ssub.s32 %s15, 2
        // Predicated region
        $region76: #{tpu_custom_call.1} parent=74 // pred_check
          %p3056 = pneg %p201
        $region77: #{tpu_custom_call.1} parent=74 // pred_check_branch
          %3058 = sbr.rel (%p3056) target = $region79
        $region78: #{tpu_custom_call.1} parent=74 // pred_region
          %s3059 = sand.u32 %s186, 1
          %s3060 = scalar_lea.sflag [#allocation4], %s3059
          %s3061 = sand.u32 %s186, 1
          %s3062 = smul.addr %s3061, 64
          %s3063 = scalar_lea.vmem [#allocation3], %s3062
          %3064 = dma.done %s3060, 1024
        $region79: #{tpu_custom_call.1} parent=74 // pred_fallthru
          _
      $region75: #{tpu_custom_call.1} parent=5 // pred_fallthru
        _
    $region6: #{tpu_custom_call.1} parent=1 // loop_footer
      %s19 = sadd.s32 1, %s15
    $region7: #{tpu_custom_call.1} parent=1 // loop_footer_branch
      %14 = sbr.rel target = $region3
    $region8: #{tpu_custom_call.1} parent=1 // loop_exit
      _
    %3065 = vsyncpa [#allocation4], 1
    %s3066 = scalar_lea.sflag [#allocation4], 1
    %3067 = vsyncpa %s3066, 1

</llo_original>
